<compile_context>
chip_gen: v7x
topology: tpu7x:2x2x1
jax: 0.10.0
libtpu: 0.0.40
codegen_flags: <defaults>
</compile_context>

<pallas_src>
import jax
import jax.numpy as jnp
from jax.experimental import pallas as pl
from jax.experimental.pallas import tpu as pltpu

B = 2
C_IN = 4
L = 20                 # forced by x_concat.view(-1, 210*10): 210 channels x 10 positions
P_OUT = L // 2         # 10 pooled positions
Y_DIM = 8              # assumption for the undefined `dim_fc` global
DIM_FC = 100 + Y_DIM

F_PAD = 64             # padded fused im2col feature dim (12 + 20 + 28 = 60 -> 64)
C_PAD = 256            # padded concatenated conv channels (100 + 70 + 40 = 210 -> 256)
H_PAD = 128            # padded FC widths (100 / 80 / 60 -> 128)
MAX_BT = 512           # batch-tile cap sized for v7x's 64 MiB VMEM (v5e/v6e can go higher)


# ----------------------------------------------------------------------------------
# Kernel
# ----------------------------------------------------------------------------------
def deepseq_kernel(x_ref, y_ref, wc_ref, bc_ref, w1_ref, b1_ref,
                   w2_ref, b2_ref, w3_ref, b3_ref, w4_ref, b4_ref,
                   w5_ref, b5_ref, out_ref):
    f32 = jnp.float32
    cdt = wc_ref.dtype                       # matmul operand dtype (f32 or bf16)
    bt = y_ref.shape[0]                      # batch tile (multiple of 8)
    half = P_OUT * bt

    # ---- conv1/conv2/conv3 fused: ONE matmul with a block-diagonal weight ---------
    # x_ref rows are ordered (parity, position, batch-in-tile): even half, then odd.
    c = jnp.dot(x_ref[...], wc_ref[...], preferred_element_type=f32)   # (2*P*bt, 256)

    # MaxPool1d(2) = max(even, odd); per-channel conv bias commutes with the pool;
    # then ReLU.  Padded channels 210..255 stay exactly 0.
    h = jnp.maximum(jnp.maximum(c[:half, :], c[half:, :]) + bc_ref[...], 0.0)  # (P*bt, 256)

    # ---- fc1: in-register accumulation over the 10 pooled positions ---------------
    # (no VMEM scratch round trip; each K=256 sub-dot fills the MXU contraction width)
    hc = h.astype(cdt)
    acc = jnp.zeros((bt, H_PAD), f32)
    for p in range(P_OUT):
        acc = acc + jnp.dot(hc[p * bt:(p + 1) * bt, :],
                            w1_ref[p * C_PAD:(p + 1) * C_PAD, :],
                            preferred_element_type=f32)
    f1 = jnp.maximum(acc + b1_ref[...], 0.0)                            # (bt, 128)

    # ---- fc2 stage 1: fused concat(f1, y) @ W2 — a single K=256 dot ---------------
    xy = jnp.concatenate([f1.astype(cdt), y_ref[...]], axis=-1)         # (bt, 256)
    z = jnp.maximum(jnp.dot(xy, w2_ref[...], preferred_element_type=f32)
                    + b2_ref[...], 0.0)
    z = jnp.maximum(jnp.dot(z.astype(cdt), w3_ref[...], preferred_element_type=f32)
                    + b3_ref[...], 0.0)
    z = jnp.maximum(jnp.dot(z.astype(cdt), w4_ref[...], preferred_element_type=f32)
                    + b4_ref[...], 0.0)                                 # (bt, 128)

    # ---- final 60 -> 1 projection, produced lane-dense as a (1, bt) row -----------
    out_row = jnp.dot(w5_ref[...].astype(f32), z.T,
                      preferred_element_type=f32) + b5_ref[...]         # (1, bt)
    out_ref[0] = out_row.astype(out_ref.dtype)


# ----------------------------------------------------------------------------------
# Wrapper-side layout glue (pure indexing, done once outside the kernel)
# ----------------------------------------------------------------------------------
def _round_up(n, m):
    return ((n + m - 1) // m) * m


def _im2col(x, k):
    """x: (B, C, L) -> (B, L, C*k) with feature index c*k + j (one gather)."""
    Bn, Cin, Ln = x.shape
    pad = (k - 1) // 2
    xpad = jnp.pad(x, ((0, 0), (0, 0), (pad, pad)))
    idx = jnp.arange(Ln)[:, None] + jnp.arange(k)[None, :]     # (L, k)
    patches = xpad[:, :, idx]                                  # (B, C, L, k)
    return jnp.transpose(patches, (0, 2, 1, 3)).reshape(Bn, Ln, Cin * k)


def _flat_conv_w(w):
    # PyTorch Conv1d weight (C_out, C_in, k) -> (C_in*k, C_out), feature index c*k + j
    c_out, c_in, k = w.shape
    return jnp.transpose(w, (1, 2, 0)).reshape(c_in * k, c_out)


def _prepare_weights(params, wdtype):
    f32 = jnp.float32
    # Block-diagonal fused conv weight (64, 256) + fused bias (1, 256).
    wc = jnp.zeros((F_PAD, C_PAD), f32)
    wc = wc.at[0:12, 0:100].set(_flat_conv_w(params['wc1']))
    wc = wc.at[12:32, 100:170].set(_flat_conv_w(params['wc2']))
    wc = wc.at[32:60, 170:210].set(_flat_conv_w(params['wc3']))
    bc = jnp.zeros((1, C_PAD), f32)
    bc = bc.at[0, 0:100].set(params['bc1'])
    bc = bc.at[0, 100:170].set(params['bc2'])
    bc = bc.at[0, 170:210].set(params['bc3'])

    # fc1 weight re-laid out to (p*C_PAD + c, out), zero-padded to (2560, 128).
    # Torch flat order is feature = c*10 + p.
    wt = params['w_fc1'].reshape(100, 210, P_OUT)              # [o, c, p]
    wt = jnp.transpose(wt, (2, 1, 0))                          # [p, c, o]
    wt = jnp.pad(wt, ((0, 0), (0, C_PAD - 210), (0, 0)))       # (P, 256, 100)
    w1 = jnp.zeros((P_OUT * C_PAD, H_PAD), f32)
    w1 = w1.at[:, :100].set(wt.reshape(P_OUT * C_PAD, 100))
    b1 = jnp.zeros((1, H_PAD), f32).at[0, :100].set(params['b_fc1'])

    # fc2 first stage: fused (256, 128) weight; rows 0..99 act on f1, rows 128..135 on y.
    w2t = params['w_fc2a']                                     # (100, 108)
    w2 = jnp.zeros((2 * H_PAD, H_PAD), f32)
    w2 = w2.at[0:100, 0:100].set(w2t[:, :100].T)
    w2 = w2.at[H_PAD:H_PAD + Y_DIM, 0:100].set(w2t[:, 100:].T)
    b2 = jnp.zeros((1, H_PAD), f32).at[0, :100].set(params['b_fc2a'])
    w3 = jnp.zeros((H_PAD, H_PAD), f32).at[:100, :80].set(params['w_fc2b'].T)
    b3 = jnp.zeros((1, H_PAD), f32).at[0, :80].set(params['b_fc2b'])
    w4 = jnp.zeros((H_PAD, H_PAD), f32).at[:80, :60].set(params['w_fc2c'].T)
    b4 = jnp.zeros((1, H_PAD), f32).at[0, :60].set(params['b_fc2c'])
    w5 = jnp.zeros((1, H_PAD), f32).at[0, :60].set(params['w_fc2d'][0])
    b5 = params['b_fc2d'].reshape(1, 1).astype(f32)

    cast = lambda w: w.astype(wdtype)
    return (cast(wc), bc, cast(w1), b1, cast(w2), b2, cast(w3), b3,
            cast(w4), b4, cast(w5), b5)


def deepseq_cnn_forward(x, y, params, *, use_bf16=False, max_bt=MAX_BT):
    f32 = jnp.float32
    Bn = x.shape[0]

    # ---- batch-tile selection: always a multiple of 8 (pad B up with dummy rows) ---
    b_pad = max(_round_up(Bn, 8), 8)
    BT = min(b_pad, max_bt)
    # Keep NB >= 2 where possible so the "parallel" axis shards across v7x's two TCs.
    if b_pad // BT == 1 and BT >= 16 and BT % 16 == 0:
        BT //= 2
    b_pad = _round_up(b_pad, BT)
    NB = b_pad // BT

    if b_pad != Bn:
        x = jnp.concatenate([x, jnp.zeros((b_pad - Bn,) + x.shape[1:], x.dtype)], axis=0)
        y = jnp.concatenate([y, jnp.zeros((b_pad - Bn,) + y.shape[1:], y.dtype)], axis=0)

    # ---- im2col (one gather per kernel size), concat features, pad to 64 ----------
    xall = jnp.concatenate([_im2col(x, 3), _im2col(x, 5), _im2col(x, 7)], axis=-1)
    xall = jnp.pad(xall, ((0, 0), (0, 0), (0, F_PAD - xall.shape[-1])))     # (b, L, 64)
    # Row layout per batch tile: (parity, position, batch-in-tile).
    xs = xall.reshape(NB, BT, P_OUT, 2, F_PAD)
    xs = jnp.transpose(xs, (0, 3, 2, 1, 4))                                 # (NB,2,P,BT,F)
    x2d = xs.reshape(NB * 2 * P_OUT * BT, F_PAD)

    y_pad = jnp.zeros((b_pad, H_PAD), f32).at[:, :Y_DIM].set(y.astype(f32))

    cdt = jnp.bfloat16 if use_bf16 else f32
    x2d = x2d.astype(cdt)
    y_pad = y_pad.astype(cdt)
    weights = _prepare_weights(params, cdt)

    rows = 2 * P_OUT * BT
    in_specs = [pl.BlockSpec((rows, F_PAD), lambda i: (i, 0)),   # im2col rows (batched)
                pl.BlockSpec((BT, H_PAD), lambda i: (i, 0))]     # y (batched, lane-padded)
    # Weights: full-array blocks with constant index maps -> stay VMEM-resident.
    in_specs += [pl.BlockSpec(w.shape, lambda i, nd=w.ndim: (0,) * nd) for w in weights]

    grid_spec = pltpu.PrefetchScalarGridSpec(
        num_scalar_prefetch=0,
        grid=(NB,),
        in_specs=in_specs,
        out_specs=pl.BlockSpec((1, 1, BT), lambda i: (i, 0, 0)),   # lane-dense output row
    )
    compiler_params = pltpu.CompilerParams(
        dimension_semantics=("parallel",),
        vmem_limit_bytes=(64 * 1024 * 1024 if BT >= 128 else None),
    )
    out = pl.pallas_call(
        deepseq_kernel,
        out_shape=jax.ShapeDtypeStruct((NB, 1, BT), f32),
        grid_spec=grid_spec,
        compiler_params=compiler_params,
    )(x2d, y_pad, *weights)

    return out.reshape(b_pad, 1)[:Bn]


# ----------------------------------------------------------------------------------
# Pure-JAX reference (same semantics as the PyTorch module in eval mode)
# ----------------------------------------------------------------------------------
def reference_forward(x, y, params):
    def conv_block(w, b):
        k = w.shape[-1]
        pad = (k - 1) // 2
        out = jax.lax.conv_general_dilated(
            x, w, window_strides=(1,), padding=[(pad, pad)],
            dimension_numbers=('NCH', 'OIH', 'NCH'))
        out = out + b[None, :, None]
        Bn, C, Ln = out.shape
        out = out.reshape(Bn, C, Ln // 2, 2).max(axis=-1)    # MaxPool1d(2)
        return jax.nn.relu(out)

    h1 = conv_block(params['wc1'], params['bc1'])
    h2 = conv_block(params['wc2'], params['bc2'])
    h3 = conv_block(params['wc3'], params['bc3'])
    xc = jnp.concatenate([h1, h2, h3], axis=1).reshape(x.shape[0], 210 * P_OUT)
    f1 = jax.nn.relu(xc @ params['w_fc1'].T + params['b_fc1'])
    xy = jnp.concatenate([f1, y], axis=1)
    z = jax.nn.relu(xy @ params['w_fc2a'].T + params['b_fc2a'])
    z = jax.nn.relu(z @ params['w_fc2b'].T + params['b_fc2b'])
    z = jax.nn.relu(z @ params['w_fc2c'].T + params['b_fc2c'])
    return z @ params['w_fc2d'].T + params['b_fc2d']


if __name__ == "__main__":
    key = jax.random.PRNGKey(0)
    ks = jax.random.split(key, 18)

    def init(k, shape, scale=0.1):
        return jax.random.normal(k, shape, dtype=jnp.float32) * scale

    params = {
        'wc1': init(ks[0], (100, C_IN, 3)), 'bc1': init(ks[1], (100,)),
        'wc2': init(ks[2], (70, C_IN, 5)),  'bc2': init(ks[3], (70,)),
        'wc3': init(ks[4], (40, C_IN, 7)),  'bc3': init(ks[5], (40,)),
        'w_fc1': init(ks[6], (100, 210 * P_OUT), 0.02), 'b_fc1': init(ks[7], (100,)),
        'w_fc2a': init(ks[8], (100, DIM_FC), 0.05), 'b_fc2a': init(ks[9], (100,)),
        'w_fc2b': init(ks[10], (80, 100), 0.05),    'b_fc2b': init(ks[11], (80,)),
        'w_fc2c': init(ks[12], (60, 80), 0.05),     'b_fc2c': init(ks[13], (60,)),
        'w_fc2d': init(ks[14], (1, 60), 0.05),      'b_fc2d': init(ks[15], (1,)),
    }
    x = jax.random.normal(ks[16], (B, C_IN, L), dtype=jnp.float32)
    y = jax.random.normal(ks[17], (B, Y_DIM), dtype=jnp.float32)

    out = deepseq_cnn_forward(x, y, params)
    out = jax.block_until_ready(out)

    ref = reference_forward(x, y, params)
    if not bool(jnp.allclose(out, ref, rtol=1e-2, atol=1e-2)):
        raise AssertionError(f"mismatch:\nkernel={out}\nref={ref}")
    print("KERNEL_OK")
</pallas_src>

<mosaic_0001>
module attributes {stable_mosaic.version = 11 : i64} {
  func.func @deepseq_kernel(%arg0: i32, %arg1: memref<160x64xf32, #tpu.memory_space<vmem>>, %arg2: memref<8x128xf32, #tpu.memory_space<vmem>>, %arg3: memref<64x256xf32, #tpu.memory_space<vmem>>, %arg4: memref<1x256xf32, #tpu.memory_space<vmem>>, %arg5: memref<2560x128xf32, #tpu.memory_space<vmem>>, %arg6: memref<1x128xf32, #tpu.memory_space<vmem>>, %arg7: memref<256x128xf32, #tpu.memory_space<vmem>>, %arg8: memref<1x128xf32, #tpu.memory_space<vmem>>, %arg9: memref<128x128xf32, #tpu.memory_space<vmem>>, %arg10: memref<1x128xf32, #tpu.memory_space<vmem>>, %arg11: memref<128x128xf32, #tpu.memory_space<vmem>>, %arg12: memref<1x128xf32, #tpu.memory_space<vmem>>, %arg13: memref<1x128xf32, #tpu.memory_space<vmem>>, %arg14: memref<1x1xf32, #tpu.memory_space<vmem>>, %arg15: memref<1x1x8xf32, #tpu.memory_space<vmem>>) attributes {dimension_semantics = [#tpu.dimension_semantics<parallel>], iteration_bounds = array<i64: 1>, scalar_prefetch = 0 : i64, scratch_operands = 0 : i64, tpu.core_type = #tpu.core_type<tc>, window_params = [{transform_indices = @transform_0, window_bounds = array<i64: 160, 64>}, {transform_indices = @transform_1, window_bounds = array<i64: 8, 128>}, {pipeline_mode = #tpu.pipeline_mode<synchronous>, transform_indices = @transform_2, window_bounds = array<i64: 64, 256>}, {pipeline_mode = #tpu.pipeline_mode<synchronous>, transform_indices = @transform_3, window_bounds = array<i64: 1, 256>}, {pipeline_mode = #tpu.pipeline_mode<synchronous>, transform_indices = @transform_4, window_bounds = array<i64: 2560, 128>}, {pipeline_mode = #tpu.pipeline_mode<synchronous>, transform_indices = @transform_5, window_bounds = array<i64: 1, 128>}, {pipeline_mode = #tpu.pipeline_mode<synchronous>, transform_indices = @transform_6, window_bounds = array<i64: 256, 128>}, {pipeline_mode = #tpu.pipeline_mode<synchronous>, transform_indices = @transform_7, window_bounds = array<i64: 1, 128>}, {pipeline_mode = #tpu.pipeline_mode<synchronous>, transform_indices = @transform_8, window_bounds = array<i64: 128, 128>}, {pipeline_mode = #tpu.pipeline_mode<synchronous>, transform_indices = @transform_9, window_bounds = array<i64: 1, 128>}, {pipeline_mode = #tpu.pipeline_mode<synchronous>, transform_indices = @transform_10, window_bounds = array<i64: 128, 128>}, {pipeline_mode = #tpu.pipeline_mode<synchronous>, transform_indices = @transform_11, window_bounds = array<i64: 1, 128>}, {pipeline_mode = #tpu.pipeline_mode<synchronous>, transform_indices = @transform_12, window_bounds = array<i64: 1, 128>}, {pipeline_mode = #tpu.pipeline_mode<synchronous>, transform_indices = @transform_13, window_bounds = array<i64: 1, 1>}, {transform_indices = @transform_14, window_bounds = array<i64: 1, 1, 8>}]} {
    %c0 = arith.constant 0 : index
    %c0_0 = arith.constant 0 : index
    %0 = vector.load %arg1[%c0, %c0_0] : memref<160x64xf32, #tpu.memory_space<vmem>>, vector<160x64xf32>
    %c0_1 = arith.constant 0 : index
    %c0_2 = arith.constant 0 : index
    %1 = vector.load %arg3[%c0_1, %c0_2] : memref<64x256xf32, #tpu.memory_space<vmem>>, vector<64x256xf32>
    %cst = arith.constant dense<0.000000e+00> : vector<160x256xf32>
    %2 = tpu.matmul %0, %1, %cst {dimension_numbers = #tpu.dot_dimension_numbers<[1], [0], [0], [1], [0, 0, 1, 1], [], []>} : vector<160x64xf32>, vector<64x256xf32>, vector<160x256xf32> -> vector<160x256xf32>
    %3 = vector.extract_strided_slice %2 {offsets = [0, 0], sizes = [80, 256], strides = [1, 1]} : vector<160x256xf32> to vector<80x256xf32>
    %4 = vector.extract_strided_slice %2 {offsets = [80, 0], sizes = [80, 256], strides = [1, 1]} : vector<160x256xf32> to vector<80x256xf32>
    %5 = arith.maximumf %3, %4 : vector<80x256xf32>
    %c0_3 = arith.constant 0 : index
    %c0_4 = arith.constant 0 : index
    %6 = vector.load %arg4[%c0_3, %c0_4] : memref<1x256xf32, #tpu.memory_space<vmem>>, vector<1x256xf32>
    %7 = vector.broadcast %6 : vector<1x256xf32> to vector<80x256xf32>
    %8 = arith.addf %5, %7 : vector<80x256xf32>
    %cst_5 = arith.constant 0.000000e+00 : f32
    %9 = vector.broadcast %cst_5 : f32 to vector<80x256xf32>
    %10 = arith.maximumf %8, %9 : vector<80x256xf32>
    %cst_6 = arith.constant 0.000000e+00 : f32
    %11 = vector.broadcast %cst_6 : f32 to vector<8x128xf32>
    %12 = vector.extract_strided_slice %10 {offsets = [0, 0], sizes = [8, 256], strides = [1, 1]} : vector<80x256xf32> to vector<8x256xf32>
    %c0_7 = arith.constant 0 : index
    %c0_8 = arith.constant 0 : index
    %13 = vector.load %arg5[%c0_7, %c0_8] : memref<2560x128xf32, #tpu.memory_space<vmem>>, vector<256x128xf32>
    %cst_9 = arith.constant dense<0.000000e+00> : vector<8x128xf32>
    %14 = tpu.matmul %12, %13, %cst_9 {dimension_numbers = #tpu.dot_dimension_numbers<[1], [0], [0], [1], [0, 0, 1, 1], [], []>} : vector<8x256xf32>, vector<256x128xf32>, vector<8x128xf32> -> vector<8x128xf32>
    %15 = arith.addf %11, %14 : vector<8x128xf32>
    %16 = vector.extract_strided_slice %10 {offsets = [8, 0], sizes = [8, 256], strides = [1, 1]} : vector<80x256xf32> to vector<8x256xf32>
    %c256 = arith.constant 256 : index
    %c0_10 = arith.constant 0 : index
    %17 = vector.load %arg5[%c256, %c0_10] : memref<2560x128xf32, #tpu.memory_space<vmem>>, vector<256x128xf32>
    %cst_11 = arith.constant dense<0.000000e+00> : vector<8x128xf32>
    %18 = tpu.matmul %16, %17, %cst_11 {dimension_numbers = #tpu.dot_dimension_numbers<[1], [0], [0], [1], [0, 0, 1, 1], [], []>} : vector<8x256xf32>, vector<256x128xf32>, vector<8x128xf32> -> vector<8x128xf32>
    %19 = arith.addf %15, %18 : vector<8x128xf32>
    %20 = vector.extract_strided_slice %10 {offsets = [16, 0], sizes = [8, 256], strides = [1, 1]} : vector<80x256xf32> to vector<8x256xf32>
    %c512 = arith.constant 512 : index
    %c0_12 = arith.constant 0 : index
    %21 = vector.load %arg5[%c512, %c0_12] : memref<2560x128xf32, #tpu.memory_space<vmem>>, vector<256x128xf32>
    %cst_13 = arith.constant dense<0.000000e+00> : vector<8x128xf32>
    %22 = tpu.matmul %20, %21, %cst_13 {dimension_numbers = #tpu.dot_dimension_numbers<[1], [0], [0], [1], [0, 0, 1, 1], [], []>} : vector<8x256xf32>, vector<256x128xf32>, vector<8x128xf32> -> vector<8x128xf32>
    %23 = arith.addf %19, %22 : vector<8x128xf32>
    %24 = vector.extract_strided_slice %10 {offsets = [24, 0], sizes = [8, 256], strides = [1, 1]} : vector<80x256xf32> to vector<8x256xf32>
    %c768 = arith.constant 768 : index
    %c0_14 = arith.constant 0 : index
    %25 = vector.load %arg5[%c768, %c0_14] : memref<2560x128xf32, #tpu.memory_space<vmem>>, vector<256x128xf32>
    %cst_15 = arith.constant dense<0.000000e+00> : vector<8x128xf32>
    %26 = tpu.matmul %24, %25, %cst_15 {dimension_numbers = #tpu.dot_dimension_numbers<[1], [0], [0], [1], [0, 0, 1, 1], [], []>} : vector<8x256xf32>, vector<256x128xf32>, vector<8x128xf32> -> vector<8x128xf32>
    %27 = arith.addf %23, %26 : vector<8x128xf32>
    %28 = vector.extract_strided_slice %10 {offsets = [32, 0], sizes = [8, 256], strides = [1, 1]} : vector<80x256xf32> to vector<8x256xf32>
    %c1024 = arith.constant 1024 : index
    %c0_16 = arith.constant 0 : index
    %29 = vector.load %arg5[%c1024, %c0_16] : memref<2560x128xf32, #tpu.memory_space<vmem>>, vector<256x128xf32>
    %cst_17 = arith.constant dense<0.000000e+00> : vector<8x128xf32>
    %30 = tpu.matmul %28, %29, %cst_17 {dimension_numbers = #tpu.dot_dimension_numbers<[1], [0], [0], [1], [0, 0, 1, 1], [], []>} : vector<8x256xf32>, vector<256x128xf32>, vector<8x128xf32> -> vector<8x128xf32>
    %31 = arith.addf %27, %30 : vector<8x128xf32>
    %32 = vector.extract_strided_slice %10 {offsets = [40, 0], sizes = [8, 256], strides = [1, 1]} : vector<80x256xf32> to vector<8x256xf32>
    %c1280 = arith.constant 1280 : index
    %c0_18 = arith.constant 0 : index
    %33 = vector.load %arg5[%c1280, %c0_18] : memref<2560x128xf32, #tpu.memory_space<vmem>>, vector<256x128xf32>
    %cst_19 = arith.constant dense<0.000000e+00> : vector<8x128xf32>
    %34 = tpu.matmul %32, %33, %cst_19 {dimension_numbers = #tpu.dot_dimension_numbers<[1], [0], [0], [1], [0, 0, 1, 1], [], []>} : vector<8x256xf32>, vector<256x128xf32>, vector<8x128xf32> -> vector<8x128xf32>
    %35 = arith.addf %31, %34 : vector<8x128xf32>
    %36 = vector.extract_strided_slice %10 {offsets = [48, 0], sizes = [8, 256], strides = [1, 1]} : vector<80x256xf32> to vector<8x256xf32>
    %c1536 = arith.constant 1536 : index
    %c0_20 = arith.constant 0 : index
    %37 = vector.load %arg5[%c1536, %c0_20] : memref<2560x128xf32, #tpu.memory_space<vmem>>, vector<256x128xf32>
    %cst_21 = arith.constant dense<0.000000e+00> : vector<8x128xf32>
    %38 = tpu.matmul %36, %37, %cst_21 {dimension_numbers = #tpu.dot_dimension_numbers<[1], [0], [0], [1], [0, 0, 1, 1], [], []>} : vector<8x256xf32>, vector<256x128xf32>, vector<8x128xf32> -> vector<8x128xf32>
    %39 = arith.addf %35, %38 : vector<8x128xf32>
    %40 = vector.extract_strided_slice %10 {offsets = [56, 0], sizes = [8, 256], strides = [1, 1]} : vector<80x256xf32> to vector<8x256xf32>
    %c1792 = arith.constant 1792 : index
    %c0_22 = arith.constant 0 : index
    %41 = vector.load %arg5[%c1792, %c0_22] : memref<2560x128xf32, #tpu.memory_space<vmem>>, vector<256x128xf32>
    %cst_23 = arith.constant dense<0.000000e+00> : vector<8x128xf32>
    %42 = tpu.matmul %40, %41, %cst_23 {dimension_numbers = #tpu.dot_dimension_numbers<[1], [0], [0], [1], [0, 0, 1, 1], [], []>} : vector<8x256xf32>, vector<256x128xf32>, vector<8x128xf32> -> vector<8x128xf32>
    %43 = arith.addf %39, %42 : vector<8x128xf32>
    %44 = vector.extract_strided_slice %10 {offsets = [64, 0], sizes = [8, 256], strides = [1, 1]} : vector<80x256xf32> to vector<8x256xf32>
    %c2048 = arith.constant 2048 : index
    %c0_24 = arith.constant 0 : index
    %45 = vector.load %arg5[%c2048, %c0_24] : memref<2560x128xf32, #tpu.memory_space<vmem>>, vector<256x128xf32>
    %cst_25 = arith.constant dense<0.000000e+00> : vector<8x128xf32>
    %46 = tpu.matmul %44, %45, %cst_25 {dimension_numbers = #tpu.dot_dimension_numbers<[1], [0], [0], [1], [0, 0, 1, 1], [], []>} : vector<8x256xf32>, vector<256x128xf32>, vector<8x128xf32> -> vector<8x128xf32>
    %47 = arith.addf %43, %46 : vector<8x128xf32>
    %48 = vector.extract_strided_slice %10 {offsets = [72, 0], sizes = [8, 256], strides = [1, 1]} : vector<80x256xf32> to vector<8x256xf32>
    %c2304 = arith.constant 2304 : index
    %c0_26 = arith.constant 0 : index
    %49 = vector.load %arg5[%c2304, %c0_26] : memref<2560x128xf32, #tpu.memory_space<vmem>>, vector<256x128xf32>
    %cst_27 = arith.constant dense<0.000000e+00> : vector<8x128xf32>
    %50 = tpu.matmul %48, %49, %cst_27 {dimension_numbers = #tpu.dot_dimension_numbers<[1], [0], [0], [1], [0, 0, 1, 1], [], []>} : vector<8x256xf32>, vector<256x128xf32>, vector<8x128xf32> -> vector<8x128xf32>
    %51 = arith.addf %47, %50 : vector<8x128xf32>
    %c0_28 = arith.constant 0 : index
    %c0_29 = arith.constant 0 : index
    %52 = vector.load %arg6[%c0_28, %c0_29] : memref<1x128xf32, #tpu.memory_space<vmem>>, vector<1x128xf32>
    %53 = vector.broadcast %52 : vector<1x128xf32> to vector<8x128xf32>
    %54 = arith.addf %51, %53 : vector<8x128xf32>
    %cst_30 = arith.constant 0.000000e+00 : f32
    %55 = vector.broadcast %cst_30 : f32 to vector<8x128xf32>
    %56 = arith.maximumf %54, %55 : vector<8x128xf32>
    %c0_31 = arith.constant 0 : index
    %c0_32 = arith.constant 0 : index
    %57 = vector.load %arg2[%c0_31, %c0_32] : memref<8x128xf32, #tpu.memory_space<vmem>>, vector<8x128xf32>
    %58 = tpu.concatenate %56, %57 in 1 : vector<8x128xf32>, vector<8x128xf32> -> vector<8x256xf32>
    %c0_33 = arith.constant 0 : index
    %c0_34 = arith.constant 0 : index
    %59 = vector.load %arg7[%c0_33, %c0_34] : memref<256x128xf32, #tpu.memory_space<vmem>>, vector<256x128xf32>
    %cst_35 = arith.constant dense<0.000000e+00> : vector<8x128xf32>
    %60 = tpu.matmul %58, %59, %cst_35 {dimension_numbers = #tpu.dot_dimension_numbers<[1], [0], [0], [1], [0, 0, 1, 1], [], []>} : vector<8x256xf32>, vector<256x128xf32>, vector<8x128xf32> -> vector<8x128xf32>
    %c0_36 = arith.constant 0 : index
    %c0_37 = arith.constant 0 : index
    %61 = vector.load %arg8[%c0_36, %c0_37] : memref<1x128xf32, #tpu.memory_space<vmem>>, vector<1x128xf32>
    %62 = vector.broadcast %61 : vector<1x128xf32> to vector<8x128xf32>
    %63 = arith.addf %60, %62 : vector<8x128xf32>
    %cst_38 = arith.constant 0.000000e+00 : f32
    %64 = vector.broadcast %cst_38 : f32 to vector<8x128xf32>
    %65 = arith.maximumf %63, %64 : vector<8x128xf32>
    %c0_39 = arith.constant 0 : index
    %c0_40 = arith.constant 0 : index
    %66 = vector.load %arg9[%c0_39, %c0_40] : memref<128x128xf32, #tpu.memory_space<vmem>>, vector<128x128xf32>
    %cst_41 = arith.constant dense<0.000000e+00> : vector<8x128xf32>
    %67 = tpu.matmul %65, %66, %cst_41 {dimension_numbers = #tpu.dot_dimension_numbers<[1], [0], [0], [1], [0, 0, 1, 1], [], []>} : vector<8x128xf32>, vector<128x128xf32>, vector<8x128xf32> -> vector<8x128xf32>
    %c0_42 = arith.constant 0 : index
    %c0_43 = arith.constant 0 : index
    %68 = vector.load %arg10[%c0_42, %c0_43] : memref<1x128xf32, #tpu.memory_space<vmem>>, vector<1x128xf32>
    %69 = vector.broadcast %68 : vector<1x128xf32> to vector<8x128xf32>
    %70 = arith.addf %67, %69 : vector<8x128xf32>
    %cst_44 = arith.constant 0.000000e+00 : f32
    %71 = vector.broadcast %cst_44 : f32 to vector<8x128xf32>
    %72 = arith.maximumf %70, %71 : vector<8x128xf32>
    %c0_45 = arith.constant 0 : index
    %c0_46 = arith.constant 0 : index
    %73 = vector.load %arg11[%c0_45, %c0_46] : memref<128x128xf32, #tpu.memory_space<vmem>>, vector<128x128xf32>
    %cst_47 = arith.constant dense<0.000000e+00> : vector<8x128xf32>
    %74 = tpu.matmul %72, %73, %cst_47 {dimension_numbers = #tpu.dot_dimension_numbers<[1], [0], [0], [1], [0, 0, 1, 1], [], []>} : vector<8x128xf32>, vector<128x128xf32>, vector<8x128xf32> -> vector<8x128xf32>
    %c0_48 = arith.constant 0 : index
    %c0_49 = arith.constant 0 : index
    %75 = vector.load %arg12[%c0_48, %c0_49] : memref<1x128xf32, #tpu.memory_space<vmem>>, vector<1x128xf32>
    %76 = vector.broadcast %75 : vector<1x128xf32> to vector<8x128xf32>
    %77 = arith.addf %74, %76 : vector<8x128xf32>
    %cst_50 = arith.constant 0.000000e+00 : f32
    %78 = vector.broadcast %cst_50 : f32 to vector<8x128xf32>
    %79 = arith.maximumf %77, %78 : vector<8x128xf32>
    %c0_51 = arith.constant 0 : index
    %c0_52 = arith.constant 0 : index
    %80 = vector.load %arg13[%c0_51, %c0_52] : memref<1x128xf32, #tpu.memory_space<vmem>>, vector<1x128xf32>
    %81 = tpu.transpose %79, [1, 0] : vector<8x128xf32> -> vector<128x8xf32>
    %cst_53 = arith.constant dense<0.000000e+00> : vector<1x8xf32>
    %82 = tpu.matmul %80, %81, %cst_53 {dimension_numbers = #tpu.dot_dimension_numbers<[1], [0], [0], [1], [0, 0, 1, 1], [], []>} : vector<1x128xf32>, vector<128x8xf32>, vector<1x8xf32> -> vector<1x8xf32>
    %c0_54 = arith.constant 0 : index
    %c0_55 = arith.constant 0 : index
    %83 = vector.load %arg14[%c0_54, %c0_55] : memref<1x1xf32, #tpu.memory_space<vmem>>, vector<1x1xf32>
    %84 = vector.broadcast %83 : vector<1x1xf32> to vector<1x8xf32>
    %85 = arith.addf %82, %84 : vector<1x8xf32>
    %c0_56 = arith.constant 0 : index
    %c0_57 = arith.constant 0 : index
    %c0_58 = arith.constant 0 : index
    %86 = vector.load %arg15[%c0_56, %c0_57, %c0_58] : memref<1x1x8xf32, #tpu.memory_space<vmem>>, vector<1x1x8xf32>
    %87 = vector.shape_cast %86 : vector<1x1x8xf32> to vector<1x8xf32>
    %88 = vector.shape_cast %85 : vector<1x8xf32> to vector<1x1x8xf32>
    tpu.vector_store %arg15[%c0_56, %c0_57, %c0_58], %88 {strides = array<i32>} : memref<1x1x8xf32, #tpu.memory_space<vmem>>, vector<1x1x8xf32>,
    return
  }
  func.func @transform_0(%arg0: i32) -> (i32, i32) {
    %c0_i32 = arith.constant 0 : i32
    %c0_i32_0 = arith.constant 0 : i32
    return %arg0, %c0_i32 : i32, i32
  }
  func.func @transform_1(%arg0: i32) -> (i32, i32) {
    %c0_i32 = arith.constant 0 : i32
    %c0_i32_0 = arith.constant 0 : i32
    return %arg0, %c0_i32 : i32, i32
  }
  func.func @transform_2(%arg0: i32) -> (i32, i32) {
    %c0_i32 = arith.constant 0 : i32
    %c0_i32_0 = arith.constant 0 : i32
    %c0_i32_1 = arith.constant 0 : i32
    return %c0_i32, %c0_i32_0 : i32, i32
  }
  func.func @transform_3(%arg0: i32) -> (i32, i32) {
    %c0_i32 = arith.constant 0 : i32
    %c0_i32_0 = arith.constant 0 : i32
    %c0_i32_1 = arith.constant 0 : i32
    return %c0_i32, %c0_i32_0 : i32, i32
  }
  func.func @transform_4(%arg0: i32) -> (i32, i32) {
    %c0_i32 = arith.constant 0 : i32
    %c0_i32_0 = arith.constant 0 : i32
    %c0_i32_1 = arith.constant 0 : i32
    return %c0_i32, %c0_i32_0 : i32, i32
  }
  func.func @transform_5(%arg0: i32) -> (i32, i32) {
    %c0_i32 = arith.constant 0 : i32
    %c0_i32_0 = arith.constant 0 : i32
    %c0_i32_1 = arith.constant 0 : i32
    return %c0_i32, %c0_i32_0 : i32, i32
  }
  func.func @transform_6(%arg0: i32) -> (i32, i32) {
    %c0_i32 = arith.constant 0 : i32
    %c0_i32_0 = arith.constant 0 : i32
    %c0_i32_1 = arith.constant 0 : i32
    return %c0_i32, %c0_i32_0 : i32, i32
  }
  func.func @transform_7(%arg0: i32) -> (i32, i32) {
    %c0_i32 = arith.constant 0 : i32
    %c0_i32_0 = arith.constant 0 : i32
    %c0_i32_1 = arith.constant 0 : i32
    return %c0_i32, %c0_i32_0 : i32, i32
  }
  func.func @transform_8(%arg0: i32) -> (i32, i32) {
    %c0_i32 = arith.constant 0 : i32
    %c0_i32_0 = arith.constant 0 : i32
    %c0_i32_1 = arith.constant 0 : i32
    return %c0_i32, %c0_i32_0 : i32, i32
  }
  func.func @transform_9(%arg0: i32) -> (i32, i32) {
    %c0_i32 = arith.constant 0 : i32
    %c0_i32_0 = arith.constant 0 : i32
    %c0_i32_1 = arith.constant 0 : i32
    return %c0_i32, %c0_i32_0 : i32, i32
  }
  func.func @transform_10(%arg0: i32) -> (i32, i32) {
    %c0_i32 = arith.constant 0 : i32
    %c0_i32_0 = arith.constant 0 : i32
    %c0_i32_1 = arith.constant 0 : i32
    return %c0_i32, %c0_i32_0 : i32, i32
  }
  func.func @transform_11(%arg0: i32) -> (i32, i32) {
    %c0_i32 = arith.constant 0 : i32
    %c0_i32_0 = arith.constant 0 : i32
    %c0_i32_1 = arith.constant 0 : i32
    return %c0_i32, %c0_i32_0 : i32, i32
  }
  func.func @transform_12(%arg0: i32) -> (i32, i32) {
    %c0_i32 = arith.constant 0 : i32
    %c0_i32_0 = arith.constant 0 : i32
    %c0_i32_1 = arith.constant 0 : i32
    return %c0_i32, %c0_i32_0 : i32, i32
  }
  func.func @transform_13(%arg0: i32) -> (i32, i32) {
    %c0_i32 = arith.constant 0 : i32
    %c0_i32_0 = arith.constant 0 : i32
    %c0_i32_1 = arith.constant 0 : i32
    return %c0_i32, %c0_i32_0 : i32, i32
  }
  func.func @transform_14(%arg0: i32) -> (i32, i32, i32) {
    %c0_i32 = arith.constant 0 : i32
    %c0_i32_0 = arith.constant 0 : i32
    %c0_i32_1 = arith.constant 0 : i32
    return %arg0, %c0_i32, %c0_i32_0 : i32, i32, i32
  }
}

</mosaic_0001>

<llo_original>
// kernel: tpu_custom_call.1
$region0: #{tpu_custom_call.1}
  #allocation0 [shape = 'u32[]', space=smem, size = 0x4, offset = 0x4, fixed_abs, tag = 'smem constant byte address 0x4 - core index']
  #allocation1 [shape = 'u32[144,128]{1,0:T(1,128)}', space=vmem, size = 0x12000, scoped, tag = 'internal scratch']
  #allocation2 [shape = 'f32[1,1]{1,0:T(1,128)S(1)}', space=vmem, size = 0x200, scoped, tag = 'scoped memory for tpu_custom_call.1']
  %s0 = inlined_call_operand.vmem [shape: f32[160,64], index: 0, kind: input, shape index: {}]
  %s1 = inlined_call_operand.hbm [shape: f32[8,128], index: 1, kind: input, shape index: {}]
  %s2 = inlined_call_operand.hbm [shape: f32[64,256], index: 2, kind: input, shape index: {}]
  %s3 = inlined_call_operand.hbm [shape: f32[1,256], index: 3, kind: input, shape index: {}]
  %s4 = inlined_call_operand.hbm [shape: f32[2560,128], index: 4, kind: input, shape index: {}]
  %s5 = inlined_call_operand.hbm [shape: f32[1,128], index: 5, kind: input, shape index: {}]
  %s6 = inlined_call_operand.hbm [shape: f32[256,128], index: 6, kind: input, shape index: {}]
  %s7 = inlined_call_operand.hbm [shape: f32[1,128], index: 7, kind: input, shape index: {}]
  %s8 = inlined_call_operand.hbm [shape: f32[128,128], index: 8, kind: input, shape index: {}]
  %s9 = inlined_call_operand.hbm [shape: f32[1,128], index: 9, kind: input, shape index: {}]
  %s10 = inlined_call_operand.hbm [shape: f32[128,128], index: 10, kind: input, shape index: {}]
  %s11 = inlined_call_operand.hbm [shape: f32[1,128], index: 11, kind: input, shape index: {}]
  %s12 = inlined_call_operand.hbm [shape: f32[1,128], index: 12, kind: input, shape index: {}]
  %s13 = inlined_call_operand.<no memory space> [shape: f32[1,1], index: 13, kind: input, shape index: {}]
  %s14 = inlined_call_operand.hbm [shape: f32[1,1,8], index: 14, kind: output, shape index: {}]
  %s15 = sld [smem:[#allocation0]]
  $region114: #{tpu_custom_call.1} parent=0
    _
  %s17 = ssub.s32 1, %s15
  %s18 = scalar_select 0, %s17, %s15
  %v19 = vstv %s13
  %20 = vst [vmem:[#allocation2] sm:$0x1] %v19
  $region1: #{tpu_custom_call.1} parent=0
    #allocation3 [shape = 'u8[4096]{0}', space=vmem, size = 0x1000, scoped, tag = 'input window, operand 1, single buffered']
    #allocation4 [shape = 's32[1]{0}', space=sflag, size = 0x4, scoped, tag = 'scoped memory for tpu_custom_call.1']
    #allocation5 [shape = 's32[1]{0}', space=sflag, size = 0x4, scoped, tag = 'scoped memory for tpu_custom_call.1']
    #allocation6 [shape = 'u8[65536]{0}', space=vmem, size = 0x10000, scoped, tag = 'input window, operand 2, single buffered']
    #allocation7 [shape = 's32[1]{0}', space=sflag, size = 0x4, scoped, tag = 'scoped memory for tpu_custom_call.1']
    #allocation8 [shape = 'u8[1024]{0}', space=vmem, size = 0x400, scoped, tag = 'input window, operand 3, single buffered']
    #allocation9 [shape = 'u8[1310720]{0}', space=vmem, size = 0x140000, scoped, tag = 'input window, operand 4, single buffered']
    #allocation10 [shape = 's32[1]{0}', space=sflag, size = 0x4, scoped, tag = 'scoped memory for tpu_custom_call.1']
    #allocation11 [shape = 'u8[512]{0}', space=vmem, size = 0x400, scoped, tag = 'input window, operand 5, single buffered']
    #allocation12 [shape = 'u8[131072]{0}', space=vmem, size = 0x20000, scoped, tag = 'input window, operand 6, single buffered']
    #allocation13 [shape = 's32[1]{0}', space=sflag, size = 0x4, scoped, tag = 'scoped memory for tpu_custom_call.1']
    #allocation14 [shape = 'u8[512]{0}', space=vmem, size = 0x400, scoped, tag = 'input window, operand 7, single buffered']
    #allocation15 [shape = 'u8[65536]{0}', space=vmem, size = 0x10000, scoped, tag = 'input window, operand 8, single buffered']
    #allocation16 [shape = 's32[1]{0}', space=sflag, size = 0x4, scoped, tag = 'scoped memory for tpu_custom_call.1']
    #allocation17 [shape = 'u8[512]{0}', space=vmem, size = 0x400, scoped, tag = 'input window, operand 9, single buffered']
    #allocation18 [shape = 'u8[65536]{0}', space=vmem, size = 0x10000, scoped, tag = 'input window, operand 10, single buffered']
    #allocation19 [shape = 's32[1]{0}', space=sflag, size = 0x4, scoped, tag = 'scoped memory for tpu_custom_call.1']
    #allocation20 [shape = 'u8[512]{0}', space=vmem, size = 0x400, scoped, tag = 'input window, operand 11, single buffered']
    #allocation21 [shape = 'u8[512]{0}', space=vmem, size = 0x400, scoped, tag = 'input window, operand 12, single buffered']
    #allocation22 [shape = 's32[1]{0}', space=sflag, size = 0x4, scoped, tag = 'scoped memory for tpu_custom_call.1']
    #allocation23 [shape = 'u8[512]{0}', space=vmem, size = 0x400, scoped, tag = 'output window, operand 0, single buffered']
    %21 = vsyncpa [#allocation4], 0
    %22 = vsyncpa [#allocation7], 0
    %23 = vsyncpa [#allocation10], 0
    %24 = vsyncpa [#allocation13], 0
    %25 = vsyncpa [#allocation16], 0
    %26 = vsyncpa [#allocation19], 0
    %27 = vsyncpa [#allocation22], 0
    %28 = vsyncpa [#allocation5], 0
    // Predicated region
    $region2: #{tpu_custom_call.1} parent=1 // pred_check
      _
    $region3: #{tpu_custom_call.1} parent=1 // pred_check_branch
      %30 = sbr.rel (0) target = $region5
    $region4: #{tpu_custom_call.1} parent=1 // pred_region
      _
    $region5: #{tpu_custom_call.1} parent=1 // pred_fallthru
      _
    // Predicated region
    $region6: #{tpu_custom_call.1} parent=1 // pred_check
      _
    $region7: #{tpu_custom_call.1} parent=1 // pred_check_branch
      %32 = sbr.rel (0) target = $region9
    $region8: #{tpu_custom_call.1} parent=1 // pred_region
      %s34 = ssub.s32 128, 128
      %35 = vsyncadd [#allocation4], %s34
      %s37 = sshll.u32 [#allocation3], 4
      %s38 = int_to_ptr.vmem [resolvable:$true] %s37
      %40 = dma.hbm_to_vmem [thread:$0]  %s1, 128, %s38, [#allocation4]
    $region9: #{tpu_custom_call.1} parent=1 // pred_fallthru
      _
    // Predicated region
    $region10: #{tpu_custom_call.1} parent=1 // pred_check
      _
    $region11: #{tpu_custom_call.1} parent=1 // pred_check_branch
      %42 = sbr.rel (0) target = $region13
    $region12: #{tpu_custom_call.1} parent=1 // pred_region
      %s44 = ssub.s32 2048, 2048
      %45 = vsyncadd [#allocation7], %s44
      %s46 = sshll.u32 [#allocation6], 4
      %s47 = int_to_ptr.vmem [resolvable:$true] %s46
      %52 = dma.hbm_to_vmem [thread:$0]  %s2, 2048, %s47, [#allocation7], 256, 256, 16
    $region13: #{tpu_custom_call.1} parent=1 // pred_fallthru
      _
    // Predicated region
    $region14: #{tpu_custom_call.1} parent=1 // pred_check
      _
    $region15: #{tpu_custom_call.1} parent=1 // pred_check_branch
      %54 = sbr.rel (0) target = $region17
    $region16: #{tpu_custom_call.1} parent=1 // pred_region
      %s56 = ssub.s32 32, 32
      %57 = vsyncadd [#allocation7], %s56
      %s59 = sshll.u32 [#allocation8], 4
      %s60 = int_to_ptr.vmem [resolvable:$true] %s59
      %62 = dma.hbm_to_vmem [thread:$0]  %s3, 32, %s60, [#allocation7]
    $region17: #{tpu_custom_call.1} parent=1 // pred_fallthru
      _
    // Predicated region
    $region18: #{tpu_custom_call.1} parent=1 // pred_check
      _
    $region19: #{tpu_custom_call.1} parent=1 // pred_check_branch
      %64 = sbr.rel (0) target = $region21
    $region20: #{tpu_custom_call.1} parent=1 // pred_region
      %s66 = ssub.s32 40960, 40960
      %67 = vsyncadd [#allocation10], %s66
      %s68 = sshll.u32 [#allocation9], 4
      %s69 = int_to_ptr.vmem [resolvable:$true] %s68
      %74 = dma.hbm_to_vmem [thread:$0]  %s4, 40960, %s69, [#allocation10], 128, 128, 8
    $region21: #{tpu_custom_call.1} parent=1 // pred_fallthru
      _
    // Predicated region
    $region22: #{tpu_custom_call.1} parent=1 // pred_check
      _
    $region23: #{tpu_custom_call.1} parent=1 // pred_check_branch
      %76 = sbr.rel (0) target = $region25
    $region24: #{tpu_custom_call.1} parent=1 // pred_region
      %s78 = ssub.s32 16, 16
      %79 = vsyncadd [#allocation10], %s78
      %s81 = sshll.u32 [#allocation11], 4
      %s82 = int_to_ptr.vmem [resolvable:$true] %s81
      %84 = dma.hbm_to_vmem [thread:$0]  %s5, 16, %s82, [#allocation10]
    $region25: #{tpu_custom_call.1} parent=1 // pred_fallthru
      _
    // Predicated region
    $region26: #{tpu_custom_call.1} parent=1 // pred_check
      _
    $region27: #{tpu_custom_call.1} parent=1 // pred_check_branch
      %86 = sbr.rel (0) target = $region29
    $region28: #{tpu_custom_call.1} parent=1 // pred_region
      %s88 = ssub.s32 4096, 4096
      %89 = vsyncadd [#allocation13], %s88
      %s90 = sshll.u32 [#allocation12], 4
      %s91 = int_to_ptr.vmem [resolvable:$true] %s90
      %96 = dma.hbm_to_vmem [thread:$0]  %s6, 4096, %s91, [#allocation13], 128, 128, 8
    $region29: #{tpu_custom_call.1} parent=1 // pred_fallthru
      _
    // Predicated region
    $region30: #{tpu_custom_call.1} parent=1 // pred_check
      _
    $region31: #{tpu_custom_call.1} parent=1 // pred_check_branch
      %98 = sbr.rel (0) target = $region33
    $region32: #{tpu_custom_call.1} parent=1 // pred_region
      %s100 = ssub.s32 16, 16
      %101 = vsyncadd [#allocation13], %s100
      %s103 = sshll.u32 [#allocation14], 4
      %s104 = int_to_ptr.vmem [resolvable:$true] %s103
      %106 = dma.hbm_to_vmem [thread:$0]  %s7, 16, %s104, [#allocation13]
    $region33: #{tpu_custom_call.1} parent=1 // pred_fallthru
      _
    // Predicated region
    $region34: #{tpu_custom_call.1} parent=1 // pred_check
      _
    $region35: #{tpu_custom_call.1} parent=1 // pred_check_branch
      %108 = sbr.rel (0) target = $region37
    $region36: #{tpu_custom_call.1} parent=1 // pred_region
      %s110 = ssub.s32 2048, 2048
      %111 = vsyncadd [#allocation16], %s110
      %s112 = sshll.u32 [#allocation15], 4
      %s113 = int_to_ptr.vmem [resolvable:$true] %s112
      %118 = dma.hbm_to_vmem [thread:$0]  %s8, 2048, %s113, [#allocation16], 128, 128, 8
    $region37: #{tpu_custom_call.1} parent=1 // pred_fallthru
      _
    // Predicated region
    $region38: #{tpu_custom_call.1} parent=1 // pred_check
      _
    $region39: #{tpu_custom_call.1} parent=1 // pred_check_branch
      %120 = sbr.rel (0) target = $region41
    $region40: #{tpu_custom_call.1} parent=1 // pred_region
      %s122 = ssub.s32 16, 16
      %123 = vsyncadd [#allocation16], %s122
      %s125 = sshll.u32 [#allocation17], 4
      %s126 = int_to_ptr.vmem [resolvable:$true] %s125
      %128 = dma.hbm_to_vmem [thread:$0]  %s9, 16, %s126, [#allocation16]
    $region41: #{tpu_custom_call.1} parent=1 // pred_fallthru
      _
    // Predicated region
    $region42: #{tpu_custom_call.1} parent=1 // pred_check
      _
    $region43: #{tpu_custom_call.1} parent=1 // pred_check_branch
      %130 = sbr.rel (0) target = $region45
    $region44: #{tpu_custom_call.1} parent=1 // pred_region
      %s132 = ssub.s32 2048, 2048
      %133 = vsyncadd [#allocation19], %s132
      %s134 = sshll.u32 [#allocation18], 4
      %s135 = int_to_ptr.vmem [resolvable:$true] %s134
      %140 = dma.hbm_to_vmem [thread:$0]  %s10, 2048, %s135, [#allocation19], 128, 128, 8
    $region45: #{tpu_custom_call.1} parent=1 // pred_fallthru
      _
    // Predicated region
    $region46: #{tpu_custom_call.1} parent=1 // pred_check
      _
    $region47: #{tpu_custom_call.1} parent=1 // pred_check_branch
      %142 = sbr.rel (0) target = $region49
    $region48: #{tpu_custom_call.1} parent=1 // pred_region
      %s144 = ssub.s32 16, 16
      %145 = vsyncadd [#allocation19], %s144
      %s147 = sshll.u32 [#allocation20], 4
      %s148 = int_to_ptr.vmem [resolvable:$true] %s147
      %150 = dma.hbm_to_vmem [thread:$0]  %s11, 16, %s148, [#allocation19]
    $region49: #{tpu_custom_call.1} parent=1 // pred_fallthru
      _
    // Predicated region
    $region50: #{tpu_custom_call.1} parent=1 // pred_check
      _
    $region51: #{tpu_custom_call.1} parent=1 // pred_check_branch
      %152 = sbr.rel (0) target = $region53
    $region52: #{tpu_custom_call.1} parent=1 // pred_region
      %s154 = ssub.s32 16, 16
      %155 = vsyncadd [#allocation22], %s154
      %s157 = sshll.u32 [#allocation21], 4
      %s158 = int_to_ptr.vmem [resolvable:$true] %s157
      %160 = dma.hbm_to_vmem [thread:$0]  %s12, 16, %s158, [#allocation22]
    $region53: #{tpu_custom_call.1} parent=1 // pred_fallthru
      _
    // Predicated region
    $region54: #{tpu_custom_call.1} parent=1 // pred_check
      _
    $region55: #{tpu_custom_call.1} parent=1 // pred_check_branch
      %162 = sbr.rel (0) target = $region57
    $region56: #{tpu_custom_call.1} parent=1 // pred_region
      _
    $region57: #{tpu_custom_call.1} parent=1 // pred_fallthru
      _
    // Predicated region
    $region58: #{tpu_custom_call.1} parent=1 // pred_check
      _
    $region59: #{tpu_custom_call.1} parent=1 // pred_check_branch
      %164 = sbr.rel (0) target = $region61
    $region60: #{tpu_custom_call.1} parent=1 // pred_region
      %165 = dma.done [#allocation4], 128
    $region61: #{tpu_custom_call.1} parent=1 // pred_fallthru
      _
    // Predicated region
    $region62: #{tpu_custom_call.1} parent=1 // pred_check
      _
    $region63: #{tpu_custom_call.1} parent=1 // pred_check_branch
      %167 = sbr.rel (0) target = $region65
    $region64: #{tpu_custom_call.1} parent=1 // pred_region
      %168 = dma.done [#allocation7], 2048
    $region65: #{tpu_custom_call.1} parent=1 // pred_fallthru
      _
    // Predicated region
    $region66: #{tpu_custom_call.1} parent=1 // pred_check
      _
    $region67: #{tpu_custom_call.1} parent=1 // pred_check_branch
      %170 = sbr.rel (0) target = $region69
    $region68: #{tpu_custom_call.1} parent=1 // pred_region
      %171 = dma.done [#allocation7], 32
    $region69: #{tpu_custom_call.1} parent=1 // pred_fallthru
      _
    // Predicated region
    $region70: #{tpu_custom_call.1} parent=1 // pred_check
      _
    $region71: #{tpu_custom_call.1} parent=1 // pred_check_branch
      %173 = sbr.rel (0) target = $region73
    $region72: #{tpu_custom_call.1} parent=1 // pred_region
      %174 = dma.done [#allocation10], 40960
    $region73: #{tpu_custom_call.1} parent=1 // pred_fallthru
      _
    // Predicated region
    $region74: #{tpu_custom_call.1} parent=1 // pred_check
      _
    $region75: #{tpu_custom_call.1} parent=1 // pred_check_branch
      %176 = sbr.rel (0) target = $region77
    $region76: #{tpu_custom_call.1} parent=1 // pred_region
      %177 = dma.done [#allocation10], 16
    $region77: #{tpu_custom_call.1} parent=1 // pred_fallthru
      _
    // Predicated region
    $region78: #{tpu_custom_call.1} parent=1 // pred_check
      _
    $region79: #{tpu_custom_call.1} parent=1 // pred_check_branch
      %179 = sbr.rel (0) target = $region81
    $region80: #{tpu_custom_call.1} parent=1 // pred_region
      %180 = dma.done [#allocation13], 4096
    $region81: #{tpu_custom_call.1} parent=1 // pred_fallthru
      _
    // Predicated region
    $region82: #{tpu_custom_call.1} parent=1 // pred_check
      _
    $region83: #{tpu_custom_call.1} parent=1 // pred_check_branch
      %182 = sbr.rel (0) target = $region85
    $region84: #{tpu_custom_call.1} parent=1 // pred_region
      %183 = dma.done [#allocation13], 16
    $region85: #{tpu_custom_call.1} parent=1 // pred_fallthru
      _
    // Predicated region
    $region86: #{tpu_custom_call.1} parent=1 // pred_check
      _
    $region87: #{tpu_custom_call.1} parent=1 // pred_check_branch
      %185 = sbr.rel (0) target = $region89
    $region88: #{tpu_custom_call.1} parent=1 // pred_region
      %186 = dma.done [#allocation16], 2048
    $region89: #{tpu_custom_call.1} parent=1 // pred_fallthru
      _
    // Predicated region
    $region90: #{tpu_custom_call.1} parent=1 // pred_check
      _
    $region91: #{tpu_custom_call.1} parent=1 // pred_check_branch
      %188 = sbr.rel (0) target = $region93
    $region92: #{tpu_custom_call.1} parent=1 // pred_region
      %189 = dma.done [#allocation16], 16
    $region93: #{tpu_custom_call.1} parent=1 // pred_fallthru
      _
    // Predicated region
    $region94: #{tpu_custom_call.1} parent=1 // pred_check
      _
    $region95: #{tpu_custom_call.1} parent=1 // pred_check_branch
      %191 = sbr.rel (0) target = $region97
    $region96: #{tpu_custom_call.1} parent=1 // pred_region
      %192 = dma.done [#allocation19], 2048
    $region97: #{tpu_custom_call.1} parent=1 // pred_fallthru
      _
    // Predicated region
    $region98: #{tpu_custom_call.1} parent=1 // pred_check
      _
    $region99: #{tpu_custom_call.1} parent=1 // pred_check_branch
      %194 = sbr.rel (0) target = $region101
    $region100: #{tpu_custom_call.1} parent=1 // pred_region
      %195 = dma.done [#allocation19], 16
    $region101: #{tpu_custom_call.1} parent=1 // pred_fallthru
      _
    // Predicated region
    $region102: #{tpu_custom_call.1} parent=1 // pred_check
      _
    $region103: #{tpu_custom_call.1} parent=1 // pred_check_branch
      %197 = sbr.rel (0) target = $region105
    $region104: #{tpu_custom_call.1} parent=1 // pred_region
      %198 = dma.done [#allocation22], 16
    $region105: #{tpu_custom_call.1} parent=1 // pred_fallthru
      _
    %v199 = vld [vmem:[%s0] sm:$0xff]
    %v200 = vld [vmem:[%s0 + $0x8] sm:$0xff]
    %v201 = vld [vmem:[%s0 + $0x10] sm:$0xff]
    %v202 = vld [vmem:[%s0 + $0x18] sm:$0xff]
    %v203 = vld [vmem:[%s0 + $0x20] sm:$0xff]
    %v204 = vld [vmem:[%s0 + $0x28] sm:$0xff]
    %v205 = vld [vmem:[%s0 + $0x30] sm:$0xff]
    %v206 = vld [vmem:[%s0 + $0x38] sm:$0xff]
    %v207 = vld [vmem:[%s0 + $0x40] sm:$0xff]
    %v208 = vld [vmem:[%s0 + $0x48] sm:$0xff]
    %v209 = vld [vmem:[%s0 + $0x50] sm:$0xff]
    %v210 = vld [vmem:[%s0 + $0x58] sm:$0xff]
    %v211 = vld [vmem:[%s0 + $0x60] sm:$0xff]
    %v212 = vld [vmem:[%s0 + $0x68] sm:$0xff]
    %v213 = vld [vmem:[%s0 + $0x70] sm:$0xff]
    %v214 = vld [vmem:[%s0 + $0x78] sm:$0xff]
    %v215 = vld [vmem:[%s0 + $0x80] sm:$0xff]
    %v216 = vld [vmem:[%s0 + $0x88] sm:$0xff]
    %v217 = vld [vmem:[%s0 + $0x90] sm:$0xff]
    %v218 = vld [vmem:[%s0 + $0x98] sm:$0xff]
    %v219 = vld [vmem:[#allocation6] sm:$0xff]
    %v220 = vld [vmem:[#allocation6 + $0x8] sm:$0xff]
    %v221 = vld [vmem:[#allocation6 + $0x10] sm:$0xff]
    %v222 = vld [vmem:[#allocation6 + $0x18] sm:$0xff]
    %v223 = vld [vmem:[#allocation6 + $0x20] sm:$0xff]
    %v224 = vld [vmem:[#allocation6 + $0x28] sm:$0xff]
    %v225 = vld [vmem:[#allocation6 + $0x30] sm:$0xff]
    %v226 = vld [vmem:[#allocation6 + $0x38] sm:$0xff]
    %v227 = vld [vmem:[#allocation6 + $0x40] sm:$0xff]
    %v228 = vld [vmem:[#allocation6 + $0x48] sm:$0xff]
    %v229 = vld [vmem:[#allocation6 + $0x50] sm:$0xff]
    %v230 = vld [vmem:[#allocation6 + $0x58] sm:$0xff]
    %v231 = vld [vmem:[#allocation6 + $0x60] sm:$0xff]
    %v232 = vld [vmem:[#allocation6 + $0x68] sm:$0xff]
    %v233 = vld [vmem:[#allocation6 + $0x70] sm:$0xff]
    %v234 = vld [vmem:[#allocation6 + $0x78] sm:$0xff]
    %vm235 = vcmask 523264
    %v237 = vsel %vm235, %v199, 0
    %v240 = vsel %vm235, %v200, 0
    %v243 = vsel %vm235, %v201, 0
    %v246 = vsel %vm235, %v202, 0
    %v249 = vsel %vm235, %v203, 0
    %v252 = vsel %vm235, %v204, 0
    %v255 = vsel %vm235, %v205, 0
    %v258 = vsel %vm235, %v206, 0
    %v261 = vsel %vm235, %v207, 0
    %v264 = vsel %vm235, %v208, 0
    %v267 = vsel %vm235, %v209, 0
    %v270 = vsel %vm235, %v210, 0
    %v273 = vsel %vm235, %v211, 0
    %v276 = vsel %vm235, %v212, 0
    %v279 = vsel %vm235, %v213, 0
    %v282 = vsel %vm235, %v214, 0
    %v285 = vsel %vm235, %v215, 0
    %v288 = vsel %vm235, %v216, 0
    %v291 = vsel %vm235, %v217, 0
    %v294 = vsel %vm235, %v218, 0
    %296 = vmatprep.subr.mxu0 %v220
    %297 = vmatpush1.msra.mxu0 %v219
    %298 = vmatprep.subr.mxu0 %v222
    %299 = vmatpush1.msra.mxu0 %v221
    %300 = vmatprep.subr.mxu0 %v224
    %301 = vmatpush1.msra.mxu0 %v223
    %302 = vmatprep.subr.mxu0 %v226
    %303 = vmatpush1.msra.mxu0 %v225
    %304 = vmatprep.subr.mxu0 %v228
    %305 = vmatpush1.msra.mxu0 %v227
    %306 = vmatprep.subr.mxu0 %v230
    %307 = vmatpush1.msra.mxu0 %v229
    %308 = vmatprep.subr.mxu0 %v232
    %309 = vmatpush1.msra.mxu0 %v231
    %310 = vmatprep.subr.mxu0 %v234
    %311 = vmatpush1.msra.mxu0 %v233
    %312 = vmatprep.subr.mxu0 0.0
    %313 = vmatpush1.msra.mxu0 0.0
    %314 = vmatprep.subr.mxu0 0.0
    %315 = vmatpush1.msra.mxu0 0.0
    %316 = vmatprep.subr.mxu0 0.0
    %317 = vmatpush1.msra.mxu0 0.0
    %318 = vmatprep.subr.mxu0 0.0
    %319 = vmatpush1.msra.mxu0 0.0
    %320 = vmatprep.subr.mxu0 0.0
    %321 = vmatpush1.msra.mxu0 0.0
    %322 = vmatprep.subr.mxu0 0.0
    %323 = vmatpush1.msra.mxu0 0.0
    %324 = vmatprep.subr.mxu0 0.0
    %325 = vmatpush1.msra.mxu0 0.0
    %326 = vmatprep.subr.mxu0 0.0
    %327 = vmatpush1.msra.mxu0 0.0
    %328 = vmatprep.subr.mxu0 0.0
    %329 = vmatpush1.msra.mxu0 0.0
    %330 = vmatprep.subr.mxu0 0.0
    %331 = vmatpush1.msra.mxu0 0.0
    %332 = vmatprep.subr.mxu0 0.0
    %333 = vmatpush1.msra.mxu0 0.0
    %334 = vmatprep.subr.mxu0 0.0
    %335 = vmatpush1.msra.mxu0 0.0
    %336 = vmatprep.subr.mxu0 0.0
    %337 = vmatpush1.msra.mxu0 0.0
    %338 = vmatprep.subr.mxu0 0.0
    %339 = vmatpush1.msra.mxu0 0.0
    %340 = vmatprep.subr.mxu0 0.0
    %341 = vmatpush1.msra.mxu0 0.0
    %342 = vmatprep.subr.mxu0 0.0
    %343 = vmatpush1.msra.mxu0 0.0
    %344 = vmatprep.subr.mxu0 0.0
    %345 = vmatpush1.msra.mxu0 0.0
    %346 = vmatprep.subr.mxu0 0.0
    %347 = vmatpush1.msra.mxu0 0.0
    %348 = vmatprep.subr.mxu0 0.0
    %349 = vmatpush1.msra.mxu0 0.0
    %350 = vmatprep.subr.mxu0 0.0
    %351 = vmatpush1.msra.mxu0 0.0
    %352 = vmatprep.subr.mxu0 0.0
    %353 = vmatpush1.msra.mxu0 0.0
    %354 = vmatprep.subr.mxu0 0.0
    %355 = vmatpush1.msra.mxu0 0.0
    %356 = vmatprep.subr.mxu0 0.0
    %357 = vmatpush1.msra.mxu0 0.0
    %358 = vmatprep.subr.mxu0 0.0
    %359 = vmatpush1.msra.mxu0 0.0
    %360 = vmatprep.mubr.f32.mxu0 0.0
    %361 = vmatmul.mubr.f32.gmra.mrb[0].mxu0 %v237
    %v362 = vpop.f32.mrb[0].mxu0
    %v363 = vadd.f32 0.0, %v362
    %v364 = vpop.f32.mrb[0].mxu0
    %v365 = vadd.f32 0.0, %v364
    %366 = vmatprep.mubr.f32.mxu0 0.0
    %367 = vmatmul.mubr.f32.gmra.mrb[0].mxu0 %v240
    %v368 = vpop.f32.mrb[0].mxu0
    %v369 = vadd.f32 0.0, %v368
    %v370 = vpop.f32.mrb[0].mxu0
    %v371 = vadd.f32 0.0, %v370
    %372 = vmatprep.mubr.f32.mxu0 0.0
    %373 = vmatmul.mubr.f32.gmra.mrb[0].mxu0 %v243
    %v374 = vpop.f32.mrb[0].mxu0
    %v375 = vadd.f32 0.0, %v374
    %v376 = vpop.f32.mrb[0].mxu0
    %v377 = vadd.f32 0.0, %v376
    %378 = vmatprep.mubr.f32.mxu0 0.0
    %379 = vmatmul.mubr.f32.gmra.mrb[0].mxu0 %v246
    %v380 = vpop.f32.mrb[0].mxu0
    %v381 = vadd.f32 0.0, %v380
    %v382 = vpop.f32.mrb[0].mxu0
    %v383 = vadd.f32 0.0, %v382
    %384 = vmatprep.mubr.f32.mxu0 0.0
    %385 = vmatmul.mubr.f32.gmra.mrb[0].mxu0 %v249
    %v386 = vpop.f32.mrb[0].mxu0
    %v387 = vadd.f32 0.0, %v386
    %v388 = vpop.f32.mrb[0].mxu0
    %v389 = vadd.f32 0.0, %v388
    %390 = vmatprep.mubr.f32.mxu0 0.0
    %391 = vmatmul.mubr.f32.gmra.mrb[0].mxu0 %v252
    %v392 = vpop.f32.mrb[0].mxu0
    %v393 = vadd.f32 0.0, %v392
    %v394 = vpop.f32.mrb[0].mxu0
    %v395 = vadd.f32 0.0, %v394
    %396 = vmatprep.mubr.f32.mxu0 0.0
    %397 = vmatmul.mubr.f32.gmra.mrb[0].mxu0 %v255
    %v398 = vpop.f32.mrb[0].mxu0
    %v399 = vadd.f32 0.0, %v398
    %v400 = vpop.f32.mrb[0].mxu0
    %v401 = vadd.f32 0.0, %v400
    %402 = vmatprep.mubr.f32.mxu0 0.0
    %403 = vmatmul.mubr.f32.gmra.mrb[0].mxu0 %v258
    %v404 = vpop.f32.mrb[0].mxu0
    %v405 = vadd.f32 0.0, %v404
    %v406 = vpop.f32.mrb[0].mxu0
    %v407 = vadd.f32 0.0, %v406
    %408 = vmatprep.mubr.f32.mxu0 0.0
    %409 = vmatmul.mubr.f32.gmra.mrb[0].mxu0 %v261
    %v410 = vpop.f32.mrb[0].mxu0
    %v411 = vadd.f32 0.0, %v410
    %v412 = vpop.f32.mrb[0].mxu0
    %v413 = vadd.f32 0.0, %v412
    %414 = vmatprep.mubr.f32.mxu0 0.0
    %415 = vmatmul.mubr.f32.gmra.mrb[0].mxu0 %v264
    %v416 = vpop.f32.mrb[0].mxu0
    %v417 = vadd.f32 0.0, %v416
    %v418 = vpop.f32.mrb[0].mxu0
    %v419 = vadd.f32 0.0, %v418
    %420 = vmatprep.mubr.f32.mxu0 0.0
    %421 = vmatmul.mubr.f32.gmra.mrb[0].mxu0 %v267
    %v422 = vpop.f32.mrb[0].mxu0
    %v423 = vadd.f32 0.0, %v422
    %v424 = vpop.f32.mrb[0].mxu0
    %v425 = vadd.f32 0.0, %v424
    %426 = vmatprep.mubr.f32.mxu0 0.0
    %427 = vmatmul.mubr.f32.gmra.mrb[0].mxu0 %v270
    %v428 = vpop.f32.mrb[0].mxu0
    %v429 = vadd.f32 0.0, %v428
    %v430 = vpop.f32.mrb[0].mxu0
    %v431 = vadd.f32 0.0, %v430
    %432 = vmatprep.mubr.f32.mxu0 0.0
    %433 = vmatmul.mubr.f32.gmra.mrb[0].mxu0 %v273
    %v434 = vpop.f32.mrb[0].mxu0
    %v435 = vadd.f32 0.0, %v434
    %v436 = vpop.f32.mrb[0].mxu0
    %v437 = vadd.f32 0.0, %v436
    %438 = vmatprep.mubr.f32.mxu0 0.0
    %439 = vmatmul.mubr.f32.gmra.mrb[0].mxu0 %v276
    %v440 = vpop.f32.mrb[0].mxu0
    %v441 = vadd.f32 0.0, %v440
    %v442 = vpop.f32.mrb[0].mxu0
    %v443 = vadd.f32 0.0, %v442
    %444 = vmatprep.mubr.f32.mxu0 0.0
    %445 = vmatmul.mubr.f32.gmra.mrb[0].mxu0 %v279
    %v446 = vpop.f32.mrb[0].mxu0
    %v447 = vadd.f32 0.0, %v446
    %v448 = vpop.f32.mrb[0].mxu0
    %v449 = vadd.f32 0.0, %v448
    %450 = vmatprep.mubr.f32.mxu0 0.0
    %451 = vmatmul.mubr.f32.gmra.mrb[0].mxu0 %v282
    %v452 = vpop.f32.mrb[0].mxu0
    %v453 = vadd.f32 0.0, %v452
    %v454 = vpop.f32.mrb[0].mxu0
    %v455 = vadd.f32 0.0, %v454
    %456 = vmatprep.mubr.f32.mxu0 0.0
    %457 = vmatmul.mubr.f32.gmra.mrb[0].mxu0 %v285
    %v458 = vpop.f32.mrb[0].mxu0
    %v459 = vadd.f32 0.0, %v458
    %v460 = vpop.f32.mrb[0].mxu0
    %v461 = vadd.f32 0.0, %v460
    %462 = vmatprep.mubr.f32.mxu0 0.0
    %463 = vmatmul.mubr.f32.gmra.mrb[0].mxu0 %v288
    %v464 = vpop.f32.mrb[0].mxu0
    %v465 = vadd.f32 0.0, %v464
    %v466 = vpop.f32.mrb[0].mxu0
    %v467 = vadd.f32 0.0, %v466
    %468 = vmatprep.mubr.f32.mxu0 0.0
    %469 = vmatmul.mubr.f32.gmra.mrb[0].mxu0 %v291
    %v470 = vpop.f32.mrb[0].mxu0
    %v471 = vadd.f32 0.0, %v470
    %v472 = vpop.f32.mrb[0].mxu0
    %v473 = vadd.f32 0.0, %v472
    %474 = vmatprep.mubr.f32.mxu0 0.0
    %475 = vmatmul.mubr.f32.gmra.mrb[0].mxu0 %v294
    %v476 = vpop.f32.mrb[0].mxu0
    %v477 = vadd.f32 0.0, %v476
    %v478 = vpop.f32.mrb[0].mxu0
    %v479 = vadd.f32 0.0, %v478
    %480 = vdwg.mxu0
    %v481 = vmax.f32 %v363, %v423
    %v482 = vmax.f32 %v365, %v425
    %v483 = vmax.f32 %v369, %v429
    %v484 = vmax.f32 %v371, %v431
    %v485 = vmax.f32 %v375, %v435
    %v486 = vmax.f32 %v377, %v437
    %v487 = vmax.f32 %v381, %v441
    %v488 = vmax.f32 %v383, %v443
    %v489 = vmax.f32 %v387, %v447
    %v490 = vmax.f32 %v389, %v449
    %v491 = vmax.f32 %v393, %v453
    %v492 = vmax.f32 %v395, %v455
    %v493 = vmax.f32 %v399, %v459
    %v494 = vmax.f32 %v401, %v461
    %v495 = vmax.f32 %v405, %v465
    %v496 = vmax.f32 %v407, %v467
    %v497 = vmax.f32 %v411, %v471
    %v498 = vmax.f32 %v413, %v473
    %v499 = vmax.f32 %v417, %v477
    %v500 = vmax.f32 %v419, %v479
    %v501 = vld [vmem:[#allocation8] sm:$0x3]
    %v503 = vlaneseq
    %v504 = vshrl.u32 %v503, 7
    %v505 = vsub.s32 0, %v504
    %v506 = vrot.slane %v501, %v505
    %v507 = vlaneseq
    %v508 = vshrl.u32 %v507, 7
    %v509 = vsub.s32 1, %v508
    %v510 = vrot.slane %v501, %v509
    %v513 = vadd.f32 %v481, %v506
    %v514 = vadd.f32 %v482, %v510
    %v515 = vadd.f32 %v483, %v506
    %v516 = vadd.f32 %v484, %v510
    %v517 = vadd.f32 %v485, %v506
    %v518 = vadd.f32 %v486, %v510
    %v519 = vadd.f32 %v487, %v506
    %v520 = vadd.f32 %v488, %v510
    %v521 = vadd.f32 %v489, %v506
    %v522 = vadd.f32 %v490, %v510
    %v523 = vadd.f32 %v491, %v506
    %v524 = vadd.f32 %v492, %v510
    %v525 = vadd.f32 %v493, %v506
    %v526 = vadd.f32 %v494, %v510
    %v527 = vadd.f32 %v495, %v506
    %v528 = vadd.f32 %v496, %v510
    %v529 = vadd.f32 %v497, %v506
    %v530 = vadd.f32 %v498, %v510
    %v531 = vadd.f32 %v499, %v506
    %v532 = vadd.f32 %v500, %v510
    %v533 = vmax.f32 %v513, 0.0
    %v534 = vmax.f32 %v514, 0.0
    %v535 = vmax.f32 %v515, 0.0
    %v536 = vmax.f32 %v516, 0.0
    %v537 = vmax.f32 %v517, 0.0
    %v538 = vmax.f32 %v518, 0.0
    %v539 = vmax.f32 %v519, 0.0
    %v540 = vmax.f32 %v520, 0.0
    %v541 = vmax.f32 %v521, 0.0
    %v542 = vmax.f32 %v522, 0.0
    %v543 = vmax.f32 %v523, 0.0
    %v544 = vmax.f32 %v524, 0.0
    %v545 = vmax.f32 %v525, 0.0
    %v546 = vmax.f32 %v526, 0.0
    %v547 = vmax.f32 %v527, 0.0
    %v548 = vmax.f32 %v528, 0.0
    %v549 = vmax.f32 %v529, 0.0
    %v550 = vmax.f32 %v530, 0.0
    %v551 = vmax.f32 %v531, 0.0
    %v552 = vmax.f32 %v532, 0.0
    %v553 = vld [vmem:[#allocation9] sm:$0xff]
    %v554 = vld [vmem:[#allocation9 + $0x8] sm:$0xff]
    %v555 = vld [vmem:[#allocation9 + $0x10] sm:$0xff]
    %v556 = vld [vmem:[#allocation9 + $0x18] sm:$0xff]
    %v557 = vld [vmem:[#allocation9 + $0x20] sm:$0xff]
    %v558 = vld [vmem:[#allocation9 + $0x28] sm:$0xff]
    %v559 = vld [vmem:[#allocation9 + $0x30] sm:$0xff]
    %v560 = vld [vmem:[#allocation9 + $0x38] sm:$0xff]
    %v561 = vld [vmem:[#allocation9 + $0x40] sm:$0xff]
    %v562 = vld [vmem:[#allocation9 + $0x48] sm:$0xff]
    %v563 = vld [vmem:[#allocation9 + $0x50] sm:$0xff]
    %v564 = vld [vmem:[#allocation9 + $0x58] sm:$0xff]
    %v565 = vld [vmem:[#allocation9 + $0x60] sm:$0xff]
    %v566 = vld [vmem:[#allocation9 + $0x68] sm:$0xff]
    %v567 = vld [vmem:[#allocation9 + $0x70] sm:$0xff]
    %v568 = vld [vmem:[#allocation9 + $0x78] sm:$0xff]
    %v569 = vld [vmem:[#allocation9 + $0x80] sm:$0xff]
    %v570 = vld [vmem:[#allocation9 + $0x88] sm:$0xff]
    %v571 = vld [vmem:[#allocation9 + $0x90] sm:$0xff]
    %v572 = vld [vmem:[#allocation9 + $0x98] sm:$0xff]
    %v573 = vld [vmem:[#allocation9 + $0xa0] sm:$0xff]
    %v574 = vld [vmem:[#allocation9 + $0xa8] sm:$0xff]
    %v575 = vld [vmem:[#allocation9 + $0xb0] sm:$0xff]
    %v576 = vld [vmem:[#allocation9 + $0xb8] sm:$0xff]
    %v577 = vld [vmem:[#allocation9 + $0xc0] sm:$0xff]
    %v578 = vld [vmem:[#allocation9 + $0xc8] sm:$0xff]
    %v579 = vld [vmem:[#allocation9 + $0xd0] sm:$0xff]
    %v580 = vld [vmem:[#allocation9 + $0xd8] sm:$0xff]
    %v581 = vld [vmem:[#allocation9 + $0xe0] sm:$0xff]
    %v582 = vld [vmem:[#allocation9 + $0xe8] sm:$0xff]
    %v583 = vld [vmem:[#allocation9 + $0xf0] sm:$0xff]
    %v584 = vld [vmem:[#allocation9 + $0xf8] sm:$0xff]
    %v585 = vld [vmem:[#allocation9 + $0x100] sm:$0xff]
    %v586 = vld [vmem:[#allocation9 + $0x108] sm:$0xff]
    %v587 = vld [vmem:[#allocation9 + $0x110] sm:$0xff]
    %v588 = vld [vmem:[#allocation9 + $0x118] sm:$0xff]
    %v589 = vld [vmem:[#allocation9 + $0x120] sm:$0xff]
    %v590 = vld [vmem:[#allocation9 + $0x128] sm:$0xff]
    %v591 = vld [vmem:[#allocation9 + $0x130] sm:$0xff]
    %v592 = vld [vmem:[#allocation9 + $0x138] sm:$0xff]
    %v593 = vld [vmem:[#allocation9 + $0x140] sm:$0xff]
    %v594 = vld [vmem:[#allocation9 + $0x148] sm:$0xff]
    %v595 = vld [vmem:[#allocation9 + $0x150] sm:$0xff]
    %v596 = vld [vmem:[#allocation9 + $0x158] sm:$0xff]
    %v597 = vld [vmem:[#allocation9 + $0x160] sm:$0xff]
    %v598 = vld [vmem:[#allocation9 + $0x168] sm:$0xff]
    %v599 = vld [vmem:[#allocation9 + $0x170] sm:$0xff]
    %v600 = vld [vmem:[#allocation9 + $0x178] sm:$0xff]
    %v601 = vld [vmem:[#allocation9 + $0x180] sm:$0xff]
    %v602 = vld [vmem:[#allocation9 + $0x188] sm:$0xff]
    %v603 = vld [vmem:[#allocation9 + $0x190] sm:$0xff]
    %v604 = vld [vmem:[#allocation9 + $0x198] sm:$0xff]
    %v605 = vld [vmem:[#allocation9 + $0x1a0] sm:$0xff]
    %v606 = vld [vmem:[#allocation9 + $0x1a8] sm:$0xff]
    %v607 = vld [vmem:[#allocation9 + $0x1b0] sm:$0xff]
    %v608 = vld [vmem:[#allocation9 + $0x1b8] sm:$0xff]
    %v609 = vld [vmem:[#allocation9 + $0x1c0] sm:$0xff]
    %v610 = vld [vmem:[#allocation9 + $0x1c8] sm:$0xff]
    %v611 = vld [vmem:[#allocation9 + $0x1d0] sm:$0xff]
    %v612 = vld [vmem:[#allocation9 + $0x1d8] sm:$0xff]
    %v613 = vld [vmem:[#allocation9 + $0x1e0] sm:$0xff]
    %v614 = vld [vmem:[#allocation9 + $0x1e8] sm:$0xff]
    %v615 = vld [vmem:[#allocation9 + $0x1f0] sm:$0xff]
    %v616 = vld [vmem:[#allocation9 + $0x1f8] sm:$0xff]
    %617 = vmatprep.subr.mxu0 0.0
    %618 = vmatpush1.msra.mxu0 %v585
    %619 = vmatprep.subr.mxu0 0.0
    %620 = vmatpush1.msra.mxu0 %v586
    %621 = vmatprep.subr.mxu0 0.0
    %622 = vmatpush1.msra.mxu0 %v587
    %623 = vmatprep.subr.mxu0 0.0
    %624 = vmatpush1.msra.mxu0 %v588
    %625 = vmatprep.subr.mxu0 0.0
    %626 = vmatpush1.msra.mxu0 %v589
    %627 = vmatprep.subr.mxu0 0.0
    %628 = vmatpush1.msra.mxu0 %v590
    %629 = vmatprep.subr.mxu0 0.0
    %630 = vmatpush1.msra.mxu0 %v591
    %631 = vmatprep.subr.mxu0 0.0
    %632 = vmatpush1.msra.mxu0 %v592
    %633 = vmatprep.subr.mxu0 0.0
    %634 = vmatpush1.msra.mxu0 %v593
    %635 = vmatprep.subr.mxu0 0.0
    %636 = vmatpush1.msra.mxu0 %v594
    %637 = vmatprep.subr.mxu0 0.0
    %638 = vmatpush1.msra.mxu0 %v595
    %639 = vmatprep.subr.mxu0 0.0
    %640 = vmatpush1.msra.mxu0 %v596
    %641 = vmatprep.subr.mxu0 0.0
    %642 = vmatpush1.msra.mxu0 %v597
    %643 = vmatprep.subr.mxu0 0.0
    %644 = vmatpush1.msra.mxu0 %v598
    %645 = vmatprep.subr.mxu0 0.0
    %646 = vmatpush1.msra.mxu0 %v599
    %647 = vmatprep.subr.mxu0 0.0
    %648 = vmatpush1.msra.mxu0 %v600
    %649 = vmatprep.subr.mxu0 0.0
    %650 = vmatpush1.msra.mxu0 %v601
    %651 = vmatprep.subr.mxu0 0.0
    %652 = vmatpush1.msra.mxu0 %v602
    %653 = vmatprep.subr.mxu0 0.0
    %654 = vmatpush1.msra.mxu0 %v603
    %655 = vmatprep.subr.mxu0 0.0
    %656 = vmatpush1.msra.mxu0 %v604
    %657 = vmatprep.subr.mxu0 0.0
    %658 = vmatpush1.msra.mxu0 %v605
    %659 = vmatprep.subr.mxu0 0.0
    %660 = vmatpush1.msra.mxu0 %v606
    %661 = vmatprep.subr.mxu0 0.0
    %662 = vmatpush1.msra.mxu0 %v607
    %663 = vmatprep.subr.mxu0 0.0
    %664 = vmatpush1.msra.mxu0 %v608
    %665 = vmatprep.subr.mxu0 0.0
    %666 = vmatpush1.msra.mxu0 %v609
    %667 = vmatprep.subr.mxu0 0.0
    %668 = vmatpush1.msra.mxu0 %v610
    %669 = vmatprep.subr.mxu0 0.0
    %670 = vmatpush1.msra.mxu0 %v611
    %671 = vmatprep.subr.mxu0 0.0
    %672 = vmatpush1.msra.mxu0 %v612
    %673 = vmatprep.subr.mxu0 0.0
    %674 = vmatpush1.msra.mxu0 %v613
    %675 = vmatprep.subr.mxu0 0.0
    %676 = vmatpush1.msra.mxu0 %v614
    %677 = vmatprep.subr.mxu0 0.0
    %678 = vmatpush1.msra.mxu0 %v615
    %679 = vmatprep.subr.mxu0 0.0
    %680 = vmatpush1.msra.mxu0 %v616
    %681 = vmatprep.mubr.f32.mxu0 %v536
    %682 = vmatmul.mubr.f32.gmra.mrb[0].mxu0 %v535
    %v683 = vpop.f32.mrb[0].mxu0
    %v684 = vadd.f32 0.0, %v683
    %v685 = vpop.f32.mrb[0].mxu0
    %686 = vdwg.mxu0
    %687 = vmatprep.subr.mxu0 0.0
    %688 = vmatpush1.msra.mxu0 %v553
    %689 = vmatprep.subr.mxu0 0.0
    %690 = vmatpush1.msra.mxu0 %v554
    %691 = vmatprep.subr.mxu0 0.0
    %692 = vmatpush1.msra.mxu0 %v555
    %693 = vmatprep.subr.mxu0 0.0
    %694 = vmatpush1.msra.mxu0 %v556
    %695 = vmatprep.subr.mxu0 0.0
    %696 = vmatpush1.msra.mxu0 %v557
    %697 = vmatprep.subr.mxu0 0.0
    %698 = vmatpush1.msra.mxu0 %v558
    %699 = vmatprep.subr.mxu0 0.0
    %700 = vmatpush1.msra.mxu0 %v559
    %701 = vmatprep.subr.mxu0 0.0
    %702 = vmatpush1.msra.mxu0 %v560
    %703 = vmatprep.subr.mxu0 0.0
    %704 = vmatpush1.msra.mxu0 %v561
    %705 = vmatprep.subr.mxu0 0.0
    %706 = vmatpush1.msra.mxu0 %v562
    %707 = vmatprep.subr.mxu0 0.0
    %708 = vmatpush1.msra.mxu0 %v563
    %709 = vmatprep.subr.mxu0 0.0
    %710 = vmatpush1.msra.mxu0 %v564
    %711 = vmatprep.subr.mxu0 0.0
    %712 = vmatpush1.msra.mxu0 %v565
    %713 = vmatprep.subr.mxu0 0.0
    %714 = vmatpush1.msra.mxu0 %v566
    %715 = vmatprep.subr.mxu0 0.0
    %716 = vmatpush1.msra.mxu0 %v567
    %717 = vmatprep.subr.mxu0 0.0
    %718 = vmatpush1.msra.mxu0 %v568
    %719 = vmatprep.subr.mxu0 0.0
    %720 = vmatpush1.msra.mxu0 %v569
    %721 = vmatprep.subr.mxu0 0.0
    %722 = vmatpush1.msra.mxu0 %v570
    %723 = vmatprep.subr.mxu0 0.0
    %724 = vmatpush1.msra.mxu0 %v571
    %725 = vmatprep.subr.mxu0 0.0
    %726 = vmatpush1.msra.mxu0 %v572
    %727 = vmatprep.subr.mxu0 0.0
    %728 = vmatpush1.msra.mxu0 %v573
    %729 = vmatprep.subr.mxu0 0.0
    %730 = vmatpush1.msra.mxu0 %v574
    %731 = vmatprep.subr.mxu0 0.0
    %732 = vmatpush1.msra.mxu0 %v575
    %733 = vmatprep.subr.mxu0 0.0
    %734 = vmatpush1.msra.mxu0 %v576
    %735 = vmatprep.subr.mxu0 0.0
    %736 = vmatpush1.msra.mxu0 %v577
    %737 = vmatprep.subr.mxu0 0.0
    %738 = vmatpush1.msra.mxu0 %v578
    %739 = vmatprep.subr.mxu0 0.0
    %740 = vmatpush1.msra.mxu0 %v579
    %741 = vmatprep.subr.mxu0 0.0
    %742 = vmatpush1.msra.mxu0 %v580
    %743 = vmatprep.subr.mxu0 0.0
    %744 = vmatpush1.msra.mxu0 %v581
    %745 = vmatprep.subr.mxu0 0.0
    %746 = vmatpush1.msra.mxu0 %v582
    %747 = vmatprep.subr.mxu0 0.0
    %748 = vmatpush1.msra.mxu0 %v583
    %749 = vmatprep.subr.mxu0 0.0
    %750 = vmatpush1.msra.mxu0 %v584
    %751 = vmatprep.mubr.f32.mxu0 %v534
    %752 = vmatmul.mubr.f32.gmra.mrb[0].mxu0 %v533
    %v753 = vpop.f32.mrb[0].mxu0
    %v754 = vadd.f32 %v684, %v753
    %v755 = vpop.f32.mrb[0].mxu0
    %756 = vdwg.mxu0
    %v757 = vld [vmem:[#allocation9 + $0x200] sm:$0xff]
    %v758 = vld [vmem:[#allocation9 + $0x208] sm:$0xff]
    %v759 = vld [vmem:[#allocation9 + $0x210] sm:$0xff]
    %v760 = vld [vmem:[#allocation9 + $0x218] sm:$0xff]
    %v761 = vld [vmem:[#allocation9 + $0x220] sm:$0xff]
    %v762 = vld [vmem:[#allocation9 + $0x228] sm:$0xff]
    %v763 = vld [vmem:[#allocation9 + $0x230] sm:$0xff]
    %v764 = vld [vmem:[#allocation9 + $0x238] sm:$0xff]
    %v765 = vld [vmem:[#allocation9 + $0x240] sm:$0xff]
    %v766 = vld [vmem:[#allocation9 + $0x248] sm:$0xff]
    %v767 = vld [vmem:[#allocation9 + $0x250] sm:$0xff]
    %v768 = vld [vmem:[#allocation9 + $0x258] sm:$0xff]
    %v769 = vld [vmem:[#allocation9 + $0x260] sm:$0xff]
    %v770 = vld [vmem:[#allocation9 + $0x268] sm:$0xff]
    %v771 = vld [vmem:[#allocation9 + $0x270] sm:$0xff]
    %v772 = vld [vmem:[#allocation9 + $0x278] sm:$0xff]
    %v773 = vld [vmem:[#allocation9 + $0x280] sm:$0xff]
    %v774 = vld [vmem:[#allocation9 + $0x288] sm:$0xff]
    %v775 = vld [vmem:[#allocation9 + $0x290] sm:$0xff]
    %v776 = vld [vmem:[#allocation9 + $0x298] sm:$0xff]
    %v777 = vld [vmem:[#allocation9 + $0x2a0] sm:$0xff]
    %v778 = vld [vmem:[#allocation9 + $0x2a8] sm:$0xff]
    %v779 = vld [vmem:[#allocation9 + $0x2b0] sm:$0xff]
    %v780 = vld [vmem:[#allocation9 + $0x2b8] sm:$0xff]
    %v781 = vld [vmem:[#allocation9 + $0x2c0] sm:$0xff]
    %v782 = vld [vmem:[#allocation9 + $0x2c8] sm:$0xff]
    %v783 = vld [vmem:[#allocation9 + $0x2d0] sm:$0xff]
    %v784 = vld [vmem:[#allocation9 + $0x2d8] sm:$0xff]
    %v785 = vld [vmem:[#allocation9 + $0x2e0] sm:$0xff]
    %v786 = vld [vmem:[#allocation9 + $0x2e8] sm:$0xff]
    %v787 = vld [vmem:[#allocation9 + $0x2f0] sm:$0xff]
    %v788 = vld [vmem:[#allocation9 + $0x2f8] sm:$0xff]
    %789 = vmatprep.subr.mxu0 0.0
    %790 = vmatpush1.msra.mxu0 %v757
    %791 = vmatprep.subr.mxu0 0.0
    %792 = vmatpush1.msra.mxu0 %v758
    %793 = vmatprep.subr.mxu0 0.0
    %794 = vmatpush1.msra.mxu0 %v759
    %795 = vmatprep.subr.mxu0 0.0
    %796 = vmatpush1.msra.mxu0 %v760
    %797 = vmatprep.subr.mxu0 0.0
    %798 = vmatpush1.msra.mxu0 %v761
    %799 = vmatprep.subr.mxu0 0.0
    %800 = vmatpush1.msra.mxu0 %v762
    %801 = vmatprep.subr.mxu0 0.0
    %802 = vmatpush1.msra.mxu0 %v763
    %803 = vmatprep.subr.mxu0 0.0
    %804 = vmatpush1.msra.mxu0 %v764
    %805 = vmatprep.subr.mxu0 0.0
    %806 = vmatpush1.msra.mxu0 %v765
    %807 = vmatprep.subr.mxu0 0.0
    %808 = vmatpush1.msra.mxu0 %v766
    %809 = vmatprep.subr.mxu0 0.0
    %810 = vmatpush1.msra.mxu0 %v767
    %811 = vmatprep.subr.mxu0 0.0
    %812 = vmatpush1.msra.mxu0 %v768
    %813 = vmatprep.subr.mxu0 0.0
    %814 = vmatpush1.msra.mxu0 %v769
    %815 = vmatprep.subr.mxu0 0.0
    %816 = vmatpush1.msra.mxu0 %v770
    %817 = vmatprep.subr.mxu0 0.0
    %818 = vmatpush1.msra.mxu0 %v771
    %819 = vmatprep.subr.mxu0 0.0
    %820 = vmatpush1.msra.mxu0 %v772
    %821 = vmatprep.subr.mxu0 0.0
    %822 = vmatpush1.msra.mxu0 %v773
    %823 = vmatprep.subr.mxu0 0.0
    %824 = vmatpush1.msra.mxu0 %v774
    %825 = vmatprep.subr.mxu0 0.0
    %826 = vmatpush1.msra.mxu0 %v775
    %827 = vmatprep.subr.mxu0 0.0
    %828 = vmatpush1.msra.mxu0 %v776
    %829 = vmatprep.subr.mxu0 0.0
    %830 = vmatpush1.msra.mxu0 %v777
    %831 = vmatprep.subr.mxu0 0.0
    %832 = vmatpush1.msra.mxu0 %v778
    %833 = vmatprep.subr.mxu0 0.0
    %834 = vmatpush1.msra.mxu0 %v779
    %835 = vmatprep.subr.mxu0 0.0
    %836 = vmatpush1.msra.mxu0 %v780
    %837 = vmatprep.subr.mxu0 0.0
    %838 = vmatpush1.msra.mxu0 %v781
    %839 = vmatprep.subr.mxu0 0.0
    %840 = vmatpush1.msra.mxu0 %v782
    %841 = vmatprep.subr.mxu0 0.0
    %842 = vmatpush1.msra.mxu0 %v783
    %843 = vmatprep.subr.mxu0 0.0
    %844 = vmatpush1.msra.mxu0 %v784
    %845 = vmatprep.subr.mxu0 0.0
    %846 = vmatpush1.msra.mxu0 %v785
    %847 = vmatprep.subr.mxu0 0.0
    %848 = vmatpush1.msra.mxu0 %v786
    %849 = vmatprep.subr.mxu0 0.0
    %850 = vmatpush1.msra.mxu0 %v787
    %851 = vmatprep.subr.mxu0 0.0
    %852 = vmatpush1.msra.mxu0 %v788
    %853 = vmatprep.mubr.f32.mxu0 %v538
    %854 = vmatmul.mubr.f32.gmra.mrb[0].mxu0 %v537
    %v855 = vpop.f32.mrb[0].mxu0
    %v856 = vadd.f32 0.0, %v855
    %v857 = vpop.f32.mrb[0].mxu0
    %858 = vdwg.mxu0
    %v859 = vadd.f32 %v754, %v856
    %v860 = vld [vmem:[#allocation9 + $0x300] sm:$0xff]
    %v861 = vld [vmem:[#allocation9 + $0x308] sm:$0xff]
    %v862 = vld [vmem:[#allocation9 + $0x310] sm:$0xff]
    %v863 = vld [vmem:[#allocation9 + $0x318] sm:$0xff]
    %v864 = vld [vmem:[#allocation9 + $0x320] sm:$0xff]
    %v865 = vld [vmem:[#allocation9 + $0x328] sm:$0xff]
    %v866 = vld [vmem:[#allocation9 + $0x330] sm:$0xff]
    %v867 = vld [vmem:[#allocation9 + $0x338] sm:$0xff]
    %v868 = vld [vmem:[#allocation9 + $0x340] sm:$0xff]
    %v869 = vld [vmem:[#allocation9 + $0x348] sm:$0xff]
    %v870 = vld [vmem:[#allocation9 + $0x350] sm:$0xff]
    %v871 = vld [vmem:[#allocation9 + $0x358] sm:$0xff]
    %v872 = vld [vmem:[#allocation9 + $0x360] sm:$0xff]
    %v873 = vld [vmem:[#allocation9 + $0x368] sm:$0xff]
    %v874 = vld [vmem:[#allocation9 + $0x370] sm:$0xff]
    %v875 = vld [vmem:[#allocation9 + $0x378] sm:$0xff]
    %v876 = vld [vmem:[#allocation9 + $0x380] sm:$0xff]
    %v877 = vld [vmem:[#allocation9 + $0x388] sm:$0xff]
    %v878 = vld [vmem:[#allocation9 + $0x390] sm:$0xff]
    %v879 = vld [vmem:[#allocation9 + $0x398] sm:$0xff]
    %v880 = vld [vmem:[#allocation9 + $0x3a0] sm:$0xff]
    %v881 = vld [vmem:[#allocation9 + $0x3a8] sm:$0xff]
    %v882 = vld [vmem:[#allocation9 + $0x3b0] sm:$0xff]
    %v883 = vld [vmem:[#allocation9 + $0x3b8] sm:$0xff]
    %v884 = vld [vmem:[#allocation9 + $0x3c0] sm:$0xff]
    %v885 = vld [vmem:[#allocation9 + $0x3c8] sm:$0xff]
    %v886 = vld [vmem:[#allocation9 + $0x3d0] sm:$0xff]
    %v887 = vld [vmem:[#allocation9 + $0x3d8] sm:$0xff]
    %v888 = vld [vmem:[#allocation9 + $0x3e0] sm:$0xff]
    %v889 = vld [vmem:[#allocation9 + $0x3e8] sm:$0xff]
    %v890 = vld [vmem:[#allocation9 + $0x3f0] sm:$0xff]
    %v891 = vld [vmem:[#allocation9 + $0x3f8] sm:$0xff]
    %892 = vmatprep.subr.mxu0 0.0
    %893 = vmatpush1.msra.mxu0 %v860
    %894 = vmatprep.subr.mxu0 0.0
    %895 = vmatpush1.msra.mxu0 %v861
    %896 = vmatprep.subr.mxu0 0.0
    %897 = vmatpush1.msra.mxu0 %v862
    %898 = vmatprep.subr.mxu0 0.0
    %899 = vmatpush1.msra.mxu0 %v863
    %900 = vmatprep.subr.mxu0 0.0
    %901 = vmatpush1.msra.mxu0 %v864
    %902 = vmatprep.subr.mxu0 0.0
    %903 = vmatpush1.msra.mxu0 %v865
    %904 = vmatprep.subr.mxu0 0.0
    %905 = vmatpush1.msra.mxu0 %v866
    %906 = vmatprep.subr.mxu0 0.0
    %907 = vmatpush1.msra.mxu0 %v867
    %908 = vmatprep.subr.mxu0 0.0
    %909 = vmatpush1.msra.mxu0 %v868
    %910 = vmatprep.subr.mxu0 0.0
    %911 = vmatpush1.msra.mxu0 %v869
    %912 = vmatprep.subr.mxu0 0.0
    %913 = vmatpush1.msra.mxu0 %v870
    %914 = vmatprep.subr.mxu0 0.0
    %915 = vmatpush1.msra.mxu0 %v871
    %916 = vmatprep.subr.mxu0 0.0
    %917 = vmatpush1.msra.mxu0 %v872
    %918 = vmatprep.subr.mxu0 0.0
    %919 = vmatpush1.msra.mxu0 %v873
    %920 = vmatprep.subr.mxu0 0.0
    %921 = vmatpush1.msra.mxu0 %v874
    %922 = vmatprep.subr.mxu0 0.0
    %923 = vmatpush1.msra.mxu0 %v875
    %924 = vmatprep.subr.mxu0 0.0
    %925 = vmatpush1.msra.mxu0 %v876
    %926 = vmatprep.subr.mxu0 0.0
    %927 = vmatpush1.msra.mxu0 %v877
    %928 = vmatprep.subr.mxu0 0.0
    %929 = vmatpush1.msra.mxu0 %v878
    %930 = vmatprep.subr.mxu0 0.0
    %931 = vmatpush1.msra.mxu0 %v879
    %932 = vmatprep.subr.mxu0 0.0
    %933 = vmatpush1.msra.mxu0 %v880
    %934 = vmatprep.subr.mxu0 0.0
    %935 = vmatpush1.msra.mxu0 %v881
    %936 = vmatprep.subr.mxu0 0.0
    %937 = vmatpush1.msra.mxu0 %v882
    %938 = vmatprep.subr.mxu0 0.0
    %939 = vmatpush1.msra.mxu0 %v883
    %940 = vmatprep.subr.mxu0 0.0
    %941 = vmatpush1.msra.mxu0 %v884
    %942 = vmatprep.subr.mxu0 0.0
    %943 = vmatpush1.msra.mxu0 %v885
    %944 = vmatprep.subr.mxu0 0.0
    %945 = vmatpush1.msra.mxu0 %v886
    %946 = vmatprep.subr.mxu0 0.0
    %947 = vmatpush1.msra.mxu0 %v887
    %948 = vmatprep.subr.mxu0 0.0
    %949 = vmatpush1.msra.mxu0 %v888
    %950 = vmatprep.subr.mxu0 0.0
    %951 = vmatpush1.msra.mxu0 %v889
    %952 = vmatprep.subr.mxu0 0.0
    %953 = vmatpush1.msra.mxu0 %v890
    %954 = vmatprep.subr.mxu0 0.0
    %955 = vmatpush1.msra.mxu0 %v891
    %956 = vmatprep.mubr.f32.mxu0 %v540
    %957 = vmatmul.mubr.f32.gmra.mrb[0].mxu0 %v539
    %v958 = vpop.f32.mrb[0].mxu0
    %v959 = vadd.f32 0.0, %v958
    %v960 = vpop.f32.mrb[0].mxu0
    %961 = vdwg.mxu0
    %v962 = vadd.f32 %v859, %v959
    %v963 = vld [vmem:[#allocation9 + $0x400] sm:$0xff]
    %v964 = vld [vmem:[#allocation9 + $0x408] sm:$0xff]
    %v965 = vld [vmem:[#allocation9 + $0x410] sm:$0xff]
    %v966 = vld [vmem:[#allocation9 + $0x418] sm:$0xff]
    %v967 = vld [vmem:[#allocation9 + $0x420] sm:$0xff]
    %v968 = vld [vmem:[#allocation9 + $0x428] sm:$0xff]
    %v969 = vld [vmem:[#allocation9 + $0x430] sm:$0xff]
    %v970 = vld [vmem:[#allocation9 + $0x438] sm:$0xff]
    %v971 = vld [vmem:[#allocation9 + $0x440] sm:$0xff]
    %v972 = vld [vmem:[#allocation9 + $0x448] sm:$0xff]
    %v973 = vld [vmem:[#allocation9 + $0x450] sm:$0xff]
    %v974 = vld [vmem:[#allocation9 + $0x458] sm:$0xff]
    %v975 = vld [vmem:[#allocation9 + $0x460] sm:$0xff]
    %v976 = vld [vmem:[#allocation9 + $0x468] sm:$0xff]
    %v977 = vld [vmem:[#allocation9 + $0x470] sm:$0xff]
    %v978 = vld [vmem:[#allocation9 + $0x478] sm:$0xff]
    %v979 = vld [vmem:[#allocation9 + $0x480] sm:$0xff]
    %v980 = vld [vmem:[#allocation9 + $0x488] sm:$0xff]
    %v981 = vld [vmem:[#allocation9 + $0x490] sm:$0xff]
    %v982 = vld [vmem:[#allocation9 + $0x498] sm:$0xff]
    %v983 = vld [vmem:[#allocation9 + $0x4a0] sm:$0xff]
    %v984 = vld [vmem:[#allocation9 + $0x4a8] sm:$0xff]
    %v985 = vld [vmem:[#allocation9 + $0x4b0] sm:$0xff]
    %v986 = vld [vmem:[#allocation9 + $0x4b8] sm:$0xff]
    %v987 = vld [vmem:[#allocation9 + $0x4c0] sm:$0xff]
    %v988 = vld [vmem:[#allocation9 + $0x4c8] sm:$0xff]
    %v989 = vld [vmem:[#allocation9 + $0x4d0] sm:$0xff]
    %v990 = vld [vmem:[#allocation9 + $0x4d8] sm:$0xff]
    %v991 = vld [vmem:[#allocation9 + $0x4e0] sm:$0xff]
    %v992 = vld [vmem:[#allocation9 + $0x4e8] sm:$0xff]
    %v993 = vld [vmem:[#allocation9 + $0x4f0] sm:$0xff]
    %v994 = vld [vmem:[#allocation9 + $0x4f8] sm:$0xff]
    %995 = vmatprep.subr.mxu0 0.0
    %996 = vmatpush1.msra.mxu0 %v963
    %997 = vmatprep.subr.mxu0 0.0
    %998 = vmatpush1.msra.mxu0 %v964
    %999 = vmatprep.subr.mxu0 0.0
    %1000 = vmatpush1.msra.mxu0 %v965
    %1001 = vmatprep.subr.mxu0 0.0
    %1002 = vmatpush1.msra.mxu0 %v966
    %1003 = vmatprep.subr.mxu0 0.0
    %1004 = vmatpush1.msra.mxu0 %v967
    %1005 = vmatprep.subr.mxu0 0.0
    %1006 = vmatpush1.msra.mxu0 %v968
    %1007 = vmatprep.subr.mxu0 0.0
    %1008 = vmatpush1.msra.mxu0 %v969
    %1009 = vmatprep.subr.mxu0 0.0
    %1010 = vmatpush1.msra.mxu0 %v970
    %1011 = vmatprep.subr.mxu0 0.0
    %1012 = vmatpush1.msra.mxu0 %v971
    %1013 = vmatprep.subr.mxu0 0.0
    %1014 = vmatpush1.msra.mxu0 %v972
    %1015 = vmatprep.subr.mxu0 0.0
    %1016 = vmatpush1.msra.mxu0 %v973
    %1017 = vmatprep.subr.mxu0 0.0
    %1018 = vmatpush1.msra.mxu0 %v974
    %1019 = vmatprep.subr.mxu0 0.0
    %1020 = vmatpush1.msra.mxu0 %v975
    %1021 = vmatprep.subr.mxu0 0.0
    %1022 = vmatpush1.msra.mxu0 %v976
    %1023 = vmatprep.subr.mxu0 0.0
    %1024 = vmatpush1.msra.mxu0 %v977
    %1025 = vmatprep.subr.mxu0 0.0
    %1026 = vmatpush1.msra.mxu0 %v978
    %1027 = vmatprep.subr.mxu0 0.0
    %1028 = vmatpush1.msra.mxu0 %v979
    %1029 = vmatprep.subr.mxu0 0.0
    %1030 = vmatpush1.msra.mxu0 %v980
    %1031 = vmatprep.subr.mxu0 0.0
    %1032 = vmatpush1.msra.mxu0 %v981
    %1033 = vmatprep.subr.mxu0 0.0
    %1034 = vmatpush1.msra.mxu0 %v982
    %1035 = vmatprep.subr.mxu0 0.0
    %1036 = vmatpush1.msra.mxu0 %v983
    %1037 = vmatprep.subr.mxu0 0.0
    %1038 = vmatpush1.msra.mxu0 %v984
    %1039 = vmatprep.subr.mxu0 0.0
    %1040 = vmatpush1.msra.mxu0 %v985
    %1041 = vmatprep.subr.mxu0 0.0
    %1042 = vmatpush1.msra.mxu0 %v986
    %1043 = vmatprep.subr.mxu0 0.0
    %1044 = vmatpush1.msra.mxu0 %v987
    %1045 = vmatprep.subr.mxu0 0.0
    %1046 = vmatpush1.msra.mxu0 %v988
    %1047 = vmatprep.subr.mxu0 0.0
    %1048 = vmatpush1.msra.mxu0 %v989
    %1049 = vmatprep.subr.mxu0 0.0
    %1050 = vmatpush1.msra.mxu0 %v990
    %1051 = vmatprep.subr.mxu0 0.0
    %1052 = vmatpush1.msra.mxu0 %v991
    %1053 = vmatprep.subr.mxu0 0.0
    %1054 = vmatpush1.msra.mxu0 %v992
    %1055 = vmatprep.subr.mxu0 0.0
    %1056 = vmatpush1.msra.mxu0 %v993
    %1057 = vmatprep.subr.mxu0 0.0
    %1058 = vmatpush1.msra.mxu0 %v994
    %1059 = vmatprep.mubr.f32.mxu0 %v542
    %1060 = vmatmul.mubr.f32.gmra.mrb[0].mxu0 %v541
    %v1061 = vpop.f32.mrb[0].mxu0
    %v1062 = vadd.f32 0.0, %v1061
    %v1063 = vpop.f32.mrb[0].mxu0
    %1064 = vdwg.mxu0
    %v1065 = vadd.f32 %v962, %v1062
    %v1066 = vld [vmem:[#allocation9 + $0x500] sm:$0xff]
    %v1067 = vld [vmem:[#allocation9 + $0x508] sm:$0xff]
    %v1068 = vld [vmem:[#allocation9 + $0x510] sm:$0xff]
    %v1069 = vld [vmem:[#allocation9 + $0x518] sm:$0xff]
    %v1070 = vld [vmem:[#allocation9 + $0x520] sm:$0xff]
    %v1071 = vld [vmem:[#allocation9 + $0x528] sm:$0xff]
    %v1072 = vld [vmem:[#allocation9 + $0x530] sm:$0xff]
    %v1073 = vld [vmem:[#allocation9 + $0x538] sm:$0xff]
    %v1074 = vld [vmem:[#allocation9 + $0x540] sm:$0xff]
    %v1075 = vld [vmem:[#allocation9 + $0x548] sm:$0xff]
    %v1076 = vld [vmem:[#allocation9 + $0x550] sm:$0xff]
    %v1077 = vld [vmem:[#allocation9 + $0x558] sm:$0xff]
    %v1078 = vld [vmem:[#allocation9 + $0x560] sm:$0xff]
    %v1079 = vld [vmem:[#allocation9 + $0x568] sm:$0xff]
    %v1080 = vld [vmem:[#allocation9 + $0x570] sm:$0xff]
    %v1081 = vld [vmem:[#allocation9 + $0x578] sm:$0xff]
    %v1082 = vld [vmem:[#allocation9 + $0x580] sm:$0xff]
    %v1083 = vld [vmem:[#allocation9 + $0x588] sm:$0xff]
    %v1084 = vld [vmem:[#allocation9 + $0x590] sm:$0xff]
    %v1085 = vld [vmem:[#allocation9 + $0x598] sm:$0xff]
    %v1086 = vld [vmem:[#allocation9 + $0x5a0] sm:$0xff]
    %v1087 = vld [vmem:[#allocation9 + $0x5a8] sm:$0xff]
    %v1088 = vld [vmem:[#allocation9 + $0x5b0] sm:$0xff]
    %v1089 = vld [vmem:[#allocation9 + $0x5b8] sm:$0xff]
    %v1090 = vld [vmem:[#allocation9 + $0x5c0] sm:$0xff]
    %v1091 = vld [vmem:[#allocation9 + $0x5c8] sm:$0xff]
    %v1092 = vld [vmem:[#allocation9 + $0x5d0] sm:$0xff]
    %v1093 = vld [vmem:[#allocation9 + $0x5d8] sm:$0xff]
    %v1094 = vld [vmem:[#allocation9 + $0x5e0] sm:$0xff]
    %v1095 = vld [vmem:[#allocation9 + $0x5e8] sm:$0xff]
    %v1096 = vld [vmem:[#allocation9 + $0x5f0] sm:$0xff]
    %v1097 = vld [vmem:[#allocation9 + $0x5f8] sm:$0xff]
    %1098 = vmatprep.subr.mxu0 0.0
    %1099 = vmatpush1.msra.mxu0 %v1066
    %1100 = vmatprep.subr.mxu0 0.0
    %1101 = vmatpush1.msra.mxu0 %v1067
    %1102 = vmatprep.subr.mxu0 0.0
    %1103 = vmatpush1.msra.mxu0 %v1068
    %1104 = vmatprep.subr.mxu0 0.0
    %1105 = vmatpush1.msra.mxu0 %v1069
    %1106 = vmatprep.subr.mxu0 0.0
    %1107 = vmatpush1.msra.mxu0 %v1070
    %1108 = vmatprep.subr.mxu0 0.0
    %1109 = vmatpush1.msra.mxu0 %v1071
    %1110 = vmatprep.subr.mxu0 0.0
    %1111 = vmatpush1.msra.mxu0 %v1072
    %1112 = vmatprep.subr.mxu0 0.0
    %1113 = vmatpush1.msra.mxu0 %v1073
    %1114 = vmatprep.subr.mxu0 0.0
    %1115 = vmatpush1.msra.mxu0 %v1074
    %1116 = vmatprep.subr.mxu0 0.0
    %1117 = vmatpush1.msra.mxu0 %v1075
    %1118 = vmatprep.subr.mxu0 0.0
    %1119 = vmatpush1.msra.mxu0 %v1076
    %1120 = vmatprep.subr.mxu0 0.0
    %1121 = vmatpush1.msra.mxu0 %v1077
    %1122 = vmatprep.subr.mxu0 0.0
    %1123 = vmatpush1.msra.mxu0 %v1078
    %1124 = vmatprep.subr.mxu0 0.0
    %1125 = vmatpush1.msra.mxu0 %v1079
    %1126 = vmatprep.subr.mxu0 0.0
    %1127 = vmatpush1.msra.mxu0 %v1080
    %1128 = vmatprep.subr.mxu0 0.0
    %1129 = vmatpush1.msra.mxu0 %v1081
    %1130 = vmatprep.subr.mxu0 0.0
    %1131 = vmatpush1.msra.mxu0 %v1082
    %1132 = vmatprep.subr.mxu0 0.0
    %1133 = vmatpush1.msra.mxu0 %v1083
    %1134 = vmatprep.subr.mxu0 0.0
    %1135 = vmatpush1.msra.mxu0 %v1084
    %1136 = vmatprep.subr.mxu0 0.0
    %1137 = vmatpush1.msra.mxu0 %v1085
    %1138 = vmatprep.subr.mxu0 0.0
    %1139 = vmatpush1.msra.mxu0 %v1086
    %1140 = vmatprep.subr.mxu0 0.0
    %1141 = vmatpush1.msra.mxu0 %v1087
    %1142 = vmatprep.subr.mxu0 0.0
    %1143 = vmatpush1.msra.mxu0 %v1088
    %1144 = vmatprep.subr.mxu0 0.0
    %1145 = vmatpush1.msra.mxu0 %v1089
    %1146 = vmatprep.subr.mxu0 0.0
    %1147 = vmatpush1.msra.mxu0 %v1090
    %1148 = vmatprep.subr.mxu0 0.0
    %1149 = vmatpush1.msra.mxu0 %v1091
    %1150 = vmatprep.subr.mxu0 0.0
    %1151 = vmatpush1.msra.mxu0 %v1092
    %1152 = vmatprep.subr.mxu0 0.0
    %1153 = vmatpush1.msra.mxu0 %v1093
    %1154 = vmatprep.subr.mxu0 0.0
    %1155 = vmatpush1.msra.mxu0 %v1094
    %1156 = vmatprep.subr.mxu0 0.0
    %1157 = vmatpush1.msra.mxu0 %v1095
    %1158 = vmatprep.subr.mxu0 0.0
    %1159 = vmatpush1.msra.mxu0 %v1096
    %1160 = vmatprep.subr.mxu0 0.0
    %1161 = vmatpush1.msra.mxu0 %v1097
    %1162 = vmatprep.mubr.f32.mxu0 %v544
    %1163 = vmatmul.mubr.f32.gmra.mrb[0].mxu0 %v543
    %v1164 = vpop.f32.mrb[0].mxu0
    %v1165 = vadd.f32 0.0, %v1164
    %v1166 = vpop.f32.mrb[0].mxu0
    %1167 = vdwg.mxu0
    %v1168 = vadd.f32 %v1065, %v1165
    %v1169 = vld [vmem:[#allocation9 + $0x600] sm:$0xff]
    %v1170 = vld [vmem:[#allocation9 + $0x608] sm:$0xff]
    %v1171 = vld [vmem:[#allocation9 + $0x610] sm:$0xff]
    %v1172 = vld [vmem:[#allocation9 + $0x618] sm:$0xff]
    %v1173 = vld [vmem:[#allocation9 + $0x620] sm:$0xff]
    %v1174 = vld [vmem:[#allocation9 + $0x628] sm:$0xff]
    %v1175 = vld [vmem:[#allocation9 + $0x630] sm:$0xff]
    %v1176 = vld [vmem:[#allocation9 + $0x638] sm:$0xff]
    %v1177 = vld [vmem:[#allocation9 + $0x640] sm:$0xff]
    %v1178 = vld [vmem:[#allocation9 + $0x648] sm:$0xff]
    %v1179 = vld [vmem:[#allocation9 + $0x650] sm:$0xff]
    %v1180 = vld [vmem:[#allocation9 + $0x658] sm:$0xff]
    %v1181 = vld [vmem:[#allocation9 + $0x660] sm:$0xff]
    %v1182 = vld [vmem:[#allocation9 + $0x668] sm:$0xff]
    %v1183 = vld [vmem:[#allocation9 + $0x670] sm:$0xff]
    %v1184 = vld [vmem:[#allocation9 + $0x678] sm:$0xff]
    %v1185 = vld [vmem:[#allocation9 + $0x680] sm:$0xff]
    %v1186 = vld [vmem:[#allocation9 + $0x688] sm:$0xff]
    %v1187 = vld [vmem:[#allocation9 + $0x690] sm:$0xff]
    %v1188 = vld [vmem:[#allocation9 + $0x698] sm:$0xff]
    %v1189 = vld [vmem:[#allocation9 + $0x6a0] sm:$0xff]
    %v1190 = vld [vmem:[#allocation9 + $0x6a8] sm:$0xff]
    %v1191 = vld [vmem:[#allocation9 + $0x6b0] sm:$0xff]
    %v1192 = vld [vmem:[#allocation9 + $0x6b8] sm:$0xff]
    %v1193 = vld [vmem:[#allocation9 + $0x6c0] sm:$0xff]
    %v1194 = vld [vmem:[#allocation9 + $0x6c8] sm:$0xff]
    %v1195 = vld [vmem:[#allocation9 + $0x6d0] sm:$0xff]
    %v1196 = vld [vmem:[#allocation9 + $0x6d8] sm:$0xff]
    %v1197 = vld [vmem:[#allocation9 + $0x6e0] sm:$0xff]
    %v1198 = vld [vmem:[#allocation9 + $0x6e8] sm:$0xff]
    %v1199 = vld [vmem:[#allocation9 + $0x6f0] sm:$0xff]
    %v1200 = vld [vmem:[#allocation9 + $0x6f8] sm:$0xff]
    %1201 = vmatprep.subr.mxu0 0.0
    %1202 = vmatpush1.msra.mxu0 %v1169
    %1203 = vmatprep.subr.mxu0 0.0
    %1204 = vmatpush1.msra.mxu0 %v1170
    %1205 = vmatprep.subr.mxu0 0.0
    %1206 = vmatpush1.msra.mxu0 %v1171
    %1207 = vmatprep.subr.mxu0 0.0
    %1208 = vmatpush1.msra.mxu0 %v1172
    %1209 = vmatprep.subr.mxu0 0.0
    %1210 = vmatpush1.msra.mxu0 %v1173
    %1211 = vmatprep.subr.mxu0 0.0
    %1212 = vmatpush1.msra.mxu0 %v1174
    %1213 = vmatprep.subr.mxu0 0.0
    %1214 = vmatpush1.msra.mxu0 %v1175
    %1215 = vmatprep.subr.mxu0 0.0
    %1216 = vmatpush1.msra.mxu0 %v1176
    %1217 = vmatprep.subr.mxu0 0.0
    %1218 = vmatpush1.msra.mxu0 %v1177
    %1219 = vmatprep.subr.mxu0 0.0
    %1220 = vmatpush1.msra.mxu0 %v1178
    %1221 = vmatprep.subr.mxu0 0.0
    %1222 = vmatpush1.msra.mxu0 %v1179
    %1223 = vmatprep.subr.mxu0 0.0
    %1224 = vmatpush1.msra.mxu0 %v1180
    %1225 = vmatprep.subr.mxu0 0.0
    %1226 = vmatpush1.msra.mxu0 %v1181
    %1227 = vmatprep.subr.mxu0 0.0
    %1228 = vmatpush1.msra.mxu0 %v1182
    %1229 = vmatprep.subr.mxu0 0.0
    %1230 = vmatpush1.msra.mxu0 %v1183
    %1231 = vmatprep.subr.mxu0 0.0
    %1232 = vmatpush1.msra.mxu0 %v1184
    %1233 = vmatprep.subr.mxu0 0.0
    %1234 = vmatpush1.msra.mxu0 %v1185
    %1235 = vmatprep.subr.mxu0 0.0
    %1236 = vmatpush1.msra.mxu0 %v1186
    %1237 = vmatprep.subr.mxu0 0.0
    %1238 = vmatpush1.msra.mxu0 %v1187
    %1239 = vmatprep.subr.mxu0 0.0
    %1240 = vmatpush1.msra.mxu0 %v1188
    %1241 = vmatprep.subr.mxu0 0.0
    %1242 = vmatpush1.msra.mxu0 %v1189
    %1243 = vmatprep.subr.mxu0 0.0
    %1244 = vmatpush1.msra.mxu0 %v1190
    %1245 = vmatprep.subr.mxu0 0.0
    %1246 = vmatpush1.msra.mxu0 %v1191
    %1247 = vmatprep.subr.mxu0 0.0
    %1248 = vmatpush1.msra.mxu0 %v1192
    %1249 = vmatprep.subr.mxu0 0.0
    %1250 = vmatpush1.msra.mxu0 %v1193
    %1251 = vmatprep.subr.mxu0 0.0
    %1252 = vmatpush1.msra.mxu0 %v1194
    %1253 = vmatprep.subr.mxu0 0.0
    %1254 = vmatpush1.msra.mxu0 %v1195
    %1255 = vmatprep.subr.mxu0 0.0
    %1256 = vmatpush1.msra.mxu0 %v1196
    %1257 = vmatprep.subr.mxu0 0.0
    %1258 = vmatpush1.msra.mxu0 %v1197
    %1259 = vmatprep.subr.mxu0 0.0
    %1260 = vmatpush1.msra.mxu0 %v1198
    %1261 = vmatprep.subr.mxu0 0.0
    %1262 = vmatpush1.msra.mxu0 %v1199
    %1263 = vmatprep.subr.mxu0 0.0
    %1264 = vmatpush1.msra.mxu0 %v1200
    %1265 = vmatprep.mubr.f32.mxu0 %v546
    %1266 = vmatmul.mubr.f32.gmra.mrb[0].mxu0 %v545
    %v1267 = vpop.f32.mrb[0].mxu0
    %v1268 = vadd.f32 0.0, %v1267
    %v1269 = vpop.f32.mrb[0].mxu0
    %1270 = vdwg.mxu0
    %v1271 = vadd.f32 %v1168, %v1268
    %v1272 = vld [vmem:[#allocation9 + $0x700] sm:$0xff]
    %v1273 = vld [vmem:[#allocation9 + $0x708] sm:$0xff]
    %v1274 = vld [vmem:[#allocation9 + $0x710] sm:$0xff]
    %v1275 = vld [vmem:[#allocation9 + $0x718] sm:$0xff]
    %v1276 = vld [vmem:[#allocation9 + $0x720] sm:$0xff]
    %v1277 = vld [vmem:[#allocation9 + $0x728] sm:$0xff]
    %v1278 = vld [vmem:[#allocation9 + $0x730] sm:$0xff]
    %v1279 = vld [vmem:[#allocation9 + $0x738] sm:$0xff]
    %v1280 = vld [vmem:[#allocation9 + $0x740] sm:$0xff]
    %v1281 = vld [vmem:[#allocation9 + $0x748] sm:$0xff]
    %v1282 = vld [vmem:[#allocation9 + $0x750] sm:$0xff]
    %v1283 = vld [vmem:[#allocation9 + $0x758] sm:$0xff]
    %v1284 = vld [vmem:[#allocation9 + $0x760] sm:$0xff]
    %v1285 = vld [vmem:[#allocation9 + $0x768] sm:$0xff]
    %v1286 = vld [vmem:[#allocation9 + $0x770] sm:$0xff]
    %v1287 = vld [vmem:[#allocation9 + $0x778] sm:$0xff]
    %v1288 = vld [vmem:[#allocation9 + $0x780] sm:$0xff]
    %v1289 = vld [vmem:[#allocation9 + $0x788] sm:$0xff]
    %v1290 = vld [vmem:[#allocation9 + $0x790] sm:$0xff]
    %v1291 = vld [vmem:[#allocation9 + $0x798] sm:$0xff]
    %v1292 = vld [vmem:[#allocation9 + $0x7a0] sm:$0xff]
    %v1293 = vld [vmem:[#allocation9 + $0x7a8] sm:$0xff]
    %v1294 = vld [vmem:[#allocation9 + $0x7b0] sm:$0xff]
    %v1295 = vld [vmem:[#allocation9 + $0x7b8] sm:$0xff]
    %v1296 = vld [vmem:[#allocation9 + $0x7c0] sm:$0xff]
    %v1297 = vld [vmem:[#allocation9 + $0x7c8] sm:$0xff]
    %v1298 = vld [vmem:[#allocation9 + $0x7d0] sm:$0xff]
    %v1299 = vld [vmem:[#allocation9 + $0x7d8] sm:$0xff]
    %v1300 = vld [vmem:[#allocation9 + $0x7e0] sm:$0xff]
    %v1301 = vld [vmem:[#allocation9 + $0x7e8] sm:$0xff]
    %v1302 = vld [vmem:[#allocation9 + $0x7f0] sm:$0xff]
    %v1303 = vld [vmem:[#allocation9 + $0x7f8] sm:$0xff]
    %1304 = vmatprep.subr.mxu0 0.0
    %1305 = vmatpush1.msra.mxu0 %v1272
    %1306 = vmatprep.subr.mxu0 0.0
    %1307 = vmatpush1.msra.mxu0 %v1273
    %1308 = vmatprep.subr.mxu0 0.0
    %1309 = vmatpush1.msra.mxu0 %v1274
    %1310 = vmatprep.subr.mxu0 0.0
    %1311 = vmatpush1.msra.mxu0 %v1275
    %1312 = vmatprep.subr.mxu0 0.0
    %1313 = vmatpush1.msra.mxu0 %v1276
    %1314 = vmatprep.subr.mxu0 0.0
    %1315 = vmatpush1.msra.mxu0 %v1277
    %1316 = vmatprep.subr.mxu0 0.0
    %1317 = vmatpush1.msra.mxu0 %v1278
    %1318 = vmatprep.subr.mxu0 0.0
    %1319 = vmatpush1.msra.mxu0 %v1279
    %1320 = vmatprep.subr.mxu0 0.0
    %1321 = vmatpush1.msra.mxu0 %v1280
    %1322 = vmatprep.subr.mxu0 0.0
    %1323 = vmatpush1.msra.mxu0 %v1281
    %1324 = vmatprep.subr.mxu0 0.0
    %1325 = vmatpush1.msra.mxu0 %v1282
    %1326 = vmatprep.subr.mxu0 0.0
    %1327 = vmatpush1.msra.mxu0 %v1283
    %1328 = vmatprep.subr.mxu0 0.0
    %1329 = vmatpush1.msra.mxu0 %v1284
    %1330 = vmatprep.subr.mxu0 0.0
    %1331 = vmatpush1.msra.mxu0 %v1285
    %1332 = vmatprep.subr.mxu0 0.0
    %1333 = vmatpush1.msra.mxu0 %v1286
    %1334 = vmatprep.subr.mxu0 0.0
    %1335 = vmatpush1.msra.mxu0 %v1287
    %1336 = vmatprep.subr.mxu0 0.0
    %1337 = vmatpush1.msra.mxu0 %v1288
    %1338 = vmatprep.subr.mxu0 0.0
    %1339 = vmatpush1.msra.mxu0 %v1289
    %1340 = vmatprep.subr.mxu0 0.0
    %1341 = vmatpush1.msra.mxu0 %v1290
    %1342 = vmatprep.subr.mxu0 0.0
    %1343 = vmatpush1.msra.mxu0 %v1291
    %1344 = vmatprep.subr.mxu0 0.0
    %1345 = vmatpush1.msra.mxu0 %v1292
    %1346 = vmatprep.subr.mxu0 0.0
    %1347 = vmatpush1.msra.mxu0 %v1293
    %1348 = vmatprep.subr.mxu0 0.0
    %1349 = vmatpush1.msra.mxu0 %v1294
    %1350 = vmatprep.subr.mxu0 0.0
    %1351 = vmatpush1.msra.mxu0 %v1295
    %1352 = vmatprep.subr.mxu0 0.0
    %1353 = vmatpush1.msra.mxu0 %v1296
    %1354 = vmatprep.subr.mxu0 0.0
    %1355 = vmatpush1.msra.mxu0 %v1297
    %1356 = vmatprep.subr.mxu0 0.0
    %1357 = vmatpush1.msra.mxu0 %v1298
    %1358 = vmatprep.subr.mxu0 0.0
    %1359 = vmatpush1.msra.mxu0 %v1299
    %1360 = vmatprep.subr.mxu0 0.0
    %1361 = vmatpush1.msra.mxu0 %v1300
    %1362 = vmatprep.subr.mxu0 0.0
    %1363 = vmatpush1.msra.mxu0 %v1301
    %1364 = vmatprep.subr.mxu0 0.0
    %1365 = vmatpush1.msra.mxu0 %v1302
    %1366 = vmatprep.subr.mxu0 0.0
    %1367 = vmatpush1.msra.mxu0 %v1303
    %1368 = vmatprep.mubr.f32.mxu0 %v548
    %1369 = vmatmul.mubr.f32.gmra.mrb[0].mxu0 %v547
    %v1370 = vpop.f32.mrb[0].mxu0
    %v1371 = vadd.f32 0.0, %v1370
    %v1372 = vpop.f32.mrb[0].mxu0
    %1373 = vdwg.mxu0
    %v1374 = vadd.f32 %v1271, %v1371
    %v1375 = vld [vmem:[#allocation9 + $0x800] sm:$0xff]
    %v1376 = vld [vmem:[#allocation9 + $0x808] sm:$0xff]
    %v1377 = vld [vmem:[#allocation9 + $0x810] sm:$0xff]
    %v1378 = vld [vmem:[#allocation9 + $0x818] sm:$0xff]
    %v1379 = vld [vmem:[#allocation9 + $0x820] sm:$0xff]
    %v1380 = vld [vmem:[#allocation9 + $0x828] sm:$0xff]
    %v1381 = vld [vmem:[#allocation9 + $0x830] sm:$0xff]
    %v1382 = vld [vmem:[#allocation9 + $0x838] sm:$0xff]
    %v1383 = vld [vmem:[#allocation9 + $0x840] sm:$0xff]
    %v1384 = vld [vmem:[#allocation9 + $0x848] sm:$0xff]
    %v1385 = vld [vmem:[#allocation9 + $0x850] sm:$0xff]
    %v1386 = vld [vmem:[#allocation9 + $0x858] sm:$0xff]
    %v1387 = vld [vmem:[#allocation9 + $0x860] sm:$0xff]
    %v1388 = vld [vmem:[#allocation9 + $0x868] sm:$0xff]
    %v1389 = vld [vmem:[#allocation9 + $0x870] sm:$0xff]
    %v1390 = vld [vmem:[#allocation9 + $0x878] sm:$0xff]
    %v1391 = vld [vmem:[#allocation9 + $0x880] sm:$0xff]
    %v1392 = vld [vmem:[#allocation9 + $0x888] sm:$0xff]
    %v1393 = vld [vmem:[#allocation9 + $0x890] sm:$0xff]
    %v1394 = vld [vmem:[#allocation9 + $0x898] sm:$0xff]
    %v1395 = vld [vmem:[#allocation9 + $0x8a0] sm:$0xff]
    %v1396 = vld [vmem:[#allocation9 + $0x8a8] sm:$0xff]
    %v1397 = vld [vmem:[#allocation9 + $0x8b0] sm:$0xff]
    %v1398 = vld [vmem:[#allocation9 + $0x8b8] sm:$0xff]
    %v1399 = vld [vmem:[#allocation9 + $0x8c0] sm:$0xff]
    %v1400 = vld [vmem:[#allocation9 + $0x8c8] sm:$0xff]
    %v1401 = vld [vmem:[#allocation9 + $0x8d0] sm:$0xff]
    %v1402 = vld [vmem:[#allocation9 + $0x8d8] sm:$0xff]
    %v1403 = vld [vmem:[#allocation9 + $0x8e0] sm:$0xff]
    %v1404 = vld [vmem:[#allocation9 + $0x8e8] sm:$0xff]
    %v1405 = vld [vmem:[#allocation9 + $0x8f0] sm:$0xff]
    %v1406 = vld [vmem:[#allocation9 + $0x8f8] sm:$0xff]
    %1407 = vmatprep.subr.mxu0 0.0
    %1408 = vmatpush1.msra.mxu0 %v1375
    %1409 = vmatprep.subr.mxu0 0.0
    %1410 = vmatpush1.msra.mxu0 %v1376
    %1411 = vmatprep.subr.mxu0 0.0
    %1412 = vmatpush1.msra.mxu0 %v1377
    %1413 = vmatprep.subr.mxu0 0.0
    %1414 = vmatpush1.msra.mxu0 %v1378
    %1415 = vmatprep.subr.mxu0 0.0
    %1416 = vmatpush1.msra.mxu0 %v1379
    %1417 = vmatprep.subr.mxu0 0.0
    %1418 = vmatpush1.msra.mxu0 %v1380
    %1419 = vmatprep.subr.mxu0 0.0
    %1420 = vmatpush1.msra.mxu0 %v1381
    %1421 = vmatprep.subr.mxu0 0.0
    %1422 = vmatpush1.msra.mxu0 %v1382
    %1423 = vmatprep.subr.mxu0 0.0
    %1424 = vmatpush1.msra.mxu0 %v1383
    %1425 = vmatprep.subr.mxu0 0.0
    %1426 = vmatpush1.msra.mxu0 %v1384
    %1427 = vmatprep.subr.mxu0 0.0
    %1428 = vmatpush1.msra.mxu0 %v1385
    %1429 = vmatprep.subr.mxu0 0.0
    %1430 = vmatpush1.msra.mxu0 %v1386
    %1431 = vmatprep.subr.mxu0 0.0
    %1432 = vmatpush1.msra.mxu0 %v1387
    %1433 = vmatprep.subr.mxu0 0.0
    %1434 = vmatpush1.msra.mxu0 %v1388
    %1435 = vmatprep.subr.mxu0 0.0
    %1436 = vmatpush1.msra.mxu0 %v1389
    %1437 = vmatprep.subr.mxu0 0.0
    %1438 = vmatpush1.msra.mxu0 %v1390
    %1439 = vmatprep.subr.mxu0 0.0
    %1440 = vmatpush1.msra.mxu0 %v1391
    %1441 = vmatprep.subr.mxu0 0.0
    %1442 = vmatpush1.msra.mxu0 %v1392
    %1443 = vmatprep.subr.mxu0 0.0
    %1444 = vmatpush1.msra.mxu0 %v1393
    %1445 = vmatprep.subr.mxu0 0.0
    %1446 = vmatpush1.msra.mxu0 %v1394
    %1447 = vmatprep.subr.mxu0 0.0
    %1448 = vmatpush1.msra.mxu0 %v1395
    %1449 = vmatprep.subr.mxu0 0.0
    %1450 = vmatpush1.msra.mxu0 %v1396
    %1451 = vmatprep.subr.mxu0 0.0
    %1452 = vmatpush1.msra.mxu0 %v1397
    %1453 = vmatprep.subr.mxu0 0.0
    %1454 = vmatpush1.msra.mxu0 %v1398
    %1455 = vmatprep.subr.mxu0 0.0
    %1456 = vmatpush1.msra.mxu0 %v1399
    %1457 = vmatprep.subr.mxu0 0.0
    %1458 = vmatpush1.msra.mxu0 %v1400
    %1459 = vmatprep.subr.mxu0 0.0
    %1460 = vmatpush1.msra.mxu0 %v1401
    %1461 = vmatprep.subr.mxu0 0.0
    %1462 = vmatpush1.msra.mxu0 %v1402
    %1463 = vmatprep.subr.mxu0 0.0
    %1464 = vmatpush1.msra.mxu0 %v1403
    %1465 = vmatprep.subr.mxu0 0.0
    %1466 = vmatpush1.msra.mxu0 %v1404
    %1467 = vmatprep.subr.mxu0 0.0
    %1468 = vmatpush1.msra.mxu0 %v1405
    %1469 = vmatprep.subr.mxu0 0.0
    %1470 = vmatpush1.msra.mxu0 %v1406
    %1471 = vmatprep.mubr.f32.mxu0 %v550
    %1472 = vmatmul.mubr.f32.gmra.mrb[0].mxu0 %v549
    %v1473 = vpop.f32.mrb[0].mxu0
    %v1474 = vadd.f32 0.0, %v1473
    %v1475 = vpop.f32.mrb[0].mxu0
    %1476 = vdwg.mxu0
    %v1477 = vadd.f32 %v1374, %v1474
    %v1478 = vld [vmem:[#allocation9 + $0x900] sm:$0xff]
    %v1479 = vld [vmem:[#allocation9 + $0x908] sm:$0xff]
    %v1480 = vld [vmem:[#allocation9 + $0x910] sm:$0xff]
    %v1481 = vld [vmem:[#allocation9 + $0x918] sm:$0xff]
    %v1482 = vld [vmem:[#allocation9 + $0x920] sm:$0xff]
    %v1483 = vld [vmem:[#allocation9 + $0x928] sm:$0xff]
    %v1484 = vld [vmem:[#allocation9 + $0x930] sm:$0xff]
    %v1485 = vld [vmem:[#allocation9 + $0x938] sm:$0xff]
    %v1486 = vld [vmem:[#allocation9 + $0x940] sm:$0xff]
    %v1487 = vld [vmem:[#allocation9 + $0x948] sm:$0xff]
    %v1488 = vld [vmem:[#allocation9 + $0x950] sm:$0xff]
    %v1489 = vld [vmem:[#allocation9 + $0x958] sm:$0xff]
    %v1490 = vld [vmem:[#allocation9 + $0x960] sm:$0xff]
    %v1491 = vld [vmem:[#allocation9 + $0x968] sm:$0xff]
    %v1492 = vld [vmem:[#allocation9 + $0x970] sm:$0xff]
    %v1493 = vld [vmem:[#allocation9 + $0x978] sm:$0xff]
    %v1494 = vld [vmem:[#allocation9 + $0x980] sm:$0xff]
    %v1495 = vld [vmem:[#allocation9 + $0x988] sm:$0xff]
    %v1496 = vld [vmem:[#allocation9 + $0x990] sm:$0xff]
    %v1497 = vld [vmem:[#allocation9 + $0x998] sm:$0xff]
    %v1498 = vld [vmem:[#allocation9 + $0x9a0] sm:$0xff]
    %v1499 = vld [vmem:[#allocation9 + $0x9a8] sm:$0xff]
    %v1500 = vld [vmem:[#allocation9 + $0x9b0] sm:$0xff]
    %v1501 = vld [vmem:[#allocation9 + $0x9b8] sm:$0xff]
    %v1502 = vld [vmem:[#allocation9 + $0x9c0] sm:$0xff]
    %v1503 = vld [vmem:[#allocation9 + $0x9c8] sm:$0xff]
    %v1504 = vld [vmem:[#allocation9 + $0x9d0] sm:$0xff]
    %v1505 = vld [vmem:[#allocation9 + $0x9d8] sm:$0xff]
    %v1506 = vld [vmem:[#allocation9 + $0x9e0] sm:$0xff]
    %v1507 = vld [vmem:[#allocation9 + $0x9e8] sm:$0xff]
    %v1508 = vld [vmem:[#allocation9 + $0x9f0] sm:$0xff]
    %v1509 = vld [vmem:[#allocation9 + $0x9f8] sm:$0xff]
    %1510 = vmatprep.subr.mxu0 0.0
    %1511 = vmatpush1.msra.mxu0 %v1478
    %1512 = vmatprep.subr.mxu0 0.0
    %1513 = vmatpush1.msra.mxu0 %v1479
    %1514 = vmatprep.subr.mxu0 0.0
    %1515 = vmatpush1.msra.mxu0 %v1480
    %1516 = vmatprep.subr.mxu0 0.0
    %1517 = vmatpush1.msra.mxu0 %v1481
    %1518 = vmatprep.subr.mxu0 0.0
    %1519 = vmatpush1.msra.mxu0 %v1482
    %1520 = vmatprep.subr.mxu0 0.0
    %1521 = vmatpush1.msra.mxu0 %v1483
    %1522 = vmatprep.subr.mxu0 0.0
    %1523 = vmatpush1.msra.mxu0 %v1484
    %1524 = vmatprep.subr.mxu0 0.0
    %1525 = vmatpush1.msra.mxu0 %v1485
    %1526 = vmatprep.subr.mxu0 0.0
    %1527 = vmatpush1.msra.mxu0 %v1486
    %1528 = vmatprep.subr.mxu0 0.0
    %1529 = vmatpush1.msra.mxu0 %v1487
    %1530 = vmatprep.subr.mxu0 0.0
    %1531 = vmatpush1.msra.mxu0 %v1488
    %1532 = vmatprep.subr.mxu0 0.0
    %1533 = vmatpush1.msra.mxu0 %v1489
    %1534 = vmatprep.subr.mxu0 0.0
    %1535 = vmatpush1.msra.mxu0 %v1490
    %1536 = vmatprep.subr.mxu0 0.0
    %1537 = vmatpush1.msra.mxu0 %v1491
    %1538 = vmatprep.subr.mxu0 0.0
    %1539 = vmatpush1.msra.mxu0 %v1492
    %1540 = vmatprep.subr.mxu0 0.0
    %1541 = vmatpush1.msra.mxu0 %v1493
    %1542 = vmatprep.subr.mxu0 0.0
    %1543 = vmatpush1.msra.mxu0 %v1494
    %1544 = vmatprep.subr.mxu0 0.0
    %1545 = vmatpush1.msra.mxu0 %v1495
    %1546 = vmatprep.subr.mxu0 0.0
    %1547 = vmatpush1.msra.mxu0 %v1496
    %1548 = vmatprep.subr.mxu0 0.0
    %1549 = vmatpush1.msra.mxu0 %v1497
    %1550 = vmatprep.subr.mxu0 0.0
    %1551 = vmatpush1.msra.mxu0 %v1498
    %1552 = vmatprep.subr.mxu0 0.0
    %1553 = vmatpush1.msra.mxu0 %v1499
    %1554 = vmatprep.subr.mxu0 0.0
    %1555 = vmatpush1.msra.mxu0 %v1500
    %1556 = vmatprep.subr.mxu0 0.0
    %1557 = vmatpush1.msra.mxu0 %v1501
    %1558 = vmatprep.subr.mxu0 0.0
    %1559 = vmatpush1.msra.mxu0 %v1502
    %1560 = vmatprep.subr.mxu0 0.0
    %1561 = vmatpush1.msra.mxu0 %v1503
    %1562 = vmatprep.subr.mxu0 0.0
    %1563 = vmatpush1.msra.mxu0 %v1504
    %1564 = vmatprep.subr.mxu0 0.0
    %1565 = vmatpush1.msra.mxu0 %v1505
    %1566 = vmatprep.subr.mxu0 0.0
    %1567 = vmatpush1.msra.mxu0 %v1506
    %1568 = vmatprep.subr.mxu0 0.0
    %1569 = vmatpush1.msra.mxu0 %v1507
    %1570 = vmatprep.subr.mxu0 0.0
    %1571 = vmatpush1.msra.mxu0 %v1508
    %1572 = vmatprep.subr.mxu0 0.0
    %1573 = vmatpush1.msra.mxu0 %v1509
    %1574 = vmatprep.mubr.f32.mxu0 %v552
    %1575 = vmatmul.mubr.f32.gmra.mrb[0].mxu0 %v551
    %v1576 = vpop.f32.mrb[0].mxu0
    %v1577 = vadd.f32 0.0, %v1576
    %v1578 = vpop.f32.mrb[0].mxu0
    %1579 = vdwg.mxu0
    %v1580 = vadd.f32 %v1477, %v1577
    %v1581 = vld [vmem:[#allocation11] sm:$0x1]
    %v1583 = vlaneseq
    %v1584 = vshrl.u32 %v1583, 7
    %v1585 = vsub.s32 0, %v1584
    %v1586 = vrot.slane %v1581, %v1585
    %v1588 = vadd.f32 %v1580, %v1586
    %v1589 = vmax.f32 %v1588, 0.0
    %v1590 = vld [vmem:[#allocation3] sm:$0xff]
    %v1591 = vld [vmem:[#allocation12] sm:$0xff]
    %v1592 = vld [vmem:[#allocation12 + $0x8] sm:$0xff]
    %v1593 = vld [vmem:[#allocation12 + $0x10] sm:$0xff]
    %v1594 = vld [vmem:[#allocation12 + $0x18] sm:$0xff]
    %v1595 = vld [vmem:[#allocation12 + $0x20] sm:$0xff]
    %v1596 = vld [vmem:[#allocation12 + $0x28] sm:$0xff]
    %v1597 = vld [vmem:[#allocation12 + $0x30] sm:$0xff]
    %v1598 = vld [vmem:[#allocation12 + $0x38] sm:$0xff]
    %v1599 = vld [vmem:[#allocation12 + $0x40] sm:$0xff]
    %v1600 = vld [vmem:[#allocation12 + $0x48] sm:$0xff]
    %v1601 = vld [vmem:[#allocation12 + $0x50] sm:$0xff]
    %v1602 = vld [vmem:[#allocation12 + $0x58] sm:$0xff]
    %v1603 = vld [vmem:[#allocation12 + $0x60] sm:$0xff]
    %v1604 = vld [vmem:[#allocation12 + $0x68] sm:$0xff]
    %v1605 = vld [vmem:[#allocation12 + $0x70] sm:$0xff]
    %v1606 = vld [vmem:[#allocation12 + $0x78] sm:$0xff]
    %v1607 = vld [vmem:[#allocation12 + $0x80] sm:$0xff]
    %v1608 = vld [vmem:[#allocation12 + $0x88] sm:$0xff]
    %v1609 = vld [vmem:[#allocation12 + $0x90] sm:$0xff]
    %v1610 = vld [vmem:[#allocation12 + $0x98] sm:$0xff]
    %v1611 = vld [vmem:[#allocation12 + $0xa0] sm:$0xff]
    %v1612 = vld [vmem:[#allocation12 + $0xa8] sm:$0xff]
    %v1613 = vld [vmem:[#allocation12 + $0xb0] sm:$0xff]
    %v1614 = vld [vmem:[#allocation12 + $0xb8] sm:$0xff]
    %v1615 = vld [vmem:[#allocation12 + $0xc0] sm:$0xff]
    %v1616 = vld [vmem:[#allocation12 + $0xc8] sm:$0xff]
    %v1617 = vld [vmem:[#allocation12 + $0xd0] sm:$0xff]
    %v1618 = vld [vmem:[#allocation12 + $0xd8] sm:$0xff]
    %v1619 = vld [vmem:[#allocation12 + $0xe0] sm:$0xff]
    %v1620 = vld [vmem:[#allocation12 + $0xe8] sm:$0xff]
    %v1621 = vld [vmem:[#allocation12 + $0xf0] sm:$0xff]
    %v1622 = vld [vmem:[#allocation12 + $0xf8] sm:$0xff]
    %v1623 = vld [vmem:[#allocation14] sm:$0x1]
    %v1625 = vlaneseq
    %v1626 = vshrl.u32 %v1625, 7
    %v1627 = vsub.s32 0, %v1626
    %v1628 = vrot.slane %v1623, %v1627
    %1630 = vmatprep.subr.mxu0 0.0
    %1631 = vmatpush1.msra.mxu0 %v1591
    %1632 = vmatprep.subr.mxu0 0.0
    %1633 = vmatpush1.msra.mxu0 %v1592
    %1634 = vmatprep.subr.mxu0 0.0
    %1635 = vmatpush1.msra.mxu0 %v1593
    %1636 = vmatprep.subr.mxu0 0.0
    %1637 = vmatpush1.msra.mxu0 %v1594
    %1638 = vmatprep.subr.mxu0 0.0
    %1639 = vmatpush1.msra.mxu0 %v1595
    %1640 = vmatprep.subr.mxu0 0.0
    %1641 = vmatpush1.msra.mxu0 %v1596
    %1642 = vmatprep.subr.mxu0 0.0
    %1643 = vmatpush1.msra.mxu0 %v1597
    %1644 = vmatprep.subr.mxu0 0.0
    %1645 = vmatpush1.msra.mxu0 %v1598
    %1646 = vmatprep.subr.mxu0 0.0
    %1647 = vmatpush1.msra.mxu0 %v1599
    %1648 = vmatprep.subr.mxu0 0.0
    %1649 = vmatpush1.msra.mxu0 %v1600
    %1650 = vmatprep.subr.mxu0 0.0
    %1651 = vmatpush1.msra.mxu0 %v1601
    %1652 = vmatprep.subr.mxu0 0.0
    %1653 = vmatpush1.msra.mxu0 %v1602
    %1654 = vmatprep.subr.mxu0 0.0
    %1655 = vmatpush1.msra.mxu0 %v1603
    %1656 = vmatprep.subr.mxu0 0.0
    %1657 = vmatpush1.msra.mxu0 %v1604
    %1658 = vmatprep.subr.mxu0 0.0
    %1659 = vmatpush1.msra.mxu0 %v1605
    %1660 = vmatprep.subr.mxu0 0.0
    %1661 = vmatpush1.msra.mxu0 %v1606
    %1662 = vmatprep.subr.mxu0 0.0
    %1663 = vmatpush1.msra.mxu0 %v1607
    %1664 = vmatprep.subr.mxu0 0.0
    %1665 = vmatpush1.msra.mxu0 %v1608
    %1666 = vmatprep.subr.mxu0 0.0
    %1667 = vmatpush1.msra.mxu0 %v1609
    %1668 = vmatprep.subr.mxu0 0.0
    %1669 = vmatpush1.msra.mxu0 %v1610
    %1670 = vmatprep.subr.mxu0 0.0
    %1671 = vmatpush1.msra.mxu0 %v1611
    %1672 = vmatprep.subr.mxu0 0.0
    %1673 = vmatpush1.msra.mxu0 %v1612
    %1674 = vmatprep.subr.mxu0 0.0
    %1675 = vmatpush1.msra.mxu0 %v1613
    %1676 = vmatprep.subr.mxu0 0.0
    %1677 = vmatpush1.msra.mxu0 %v1614
    %1678 = vmatprep.subr.mxu0 0.0
    %1679 = vmatpush1.msra.mxu0 %v1615
    %1680 = vmatprep.subr.mxu0 0.0
    %1681 = vmatpush1.msra.mxu0 %v1616
    %1682 = vmatprep.subr.mxu0 0.0
    %1683 = vmatpush1.msra.mxu0 %v1617
    %1684 = vmatprep.subr.mxu0 0.0
    %1685 = vmatpush1.msra.mxu0 %v1618
    %1686 = vmatprep.subr.mxu0 0.0
    %1687 = vmatpush1.msra.mxu0 %v1619
    %1688 = vmatprep.subr.mxu0 0.0
    %1689 = vmatpush1.msra.mxu0 %v1620
    %1690 = vmatprep.subr.mxu0 0.0
    %1691 = vmatpush1.msra.mxu0 %v1621
    %1692 = vmatprep.subr.mxu0 0.0
    %1693 = vmatpush1.msra.mxu0 %v1622
    %1694 = vmatprep.mubr.f32.mxu0 %v1590
    %1695 = vmatmul.mubr.f32.gmra.mrb[0].mxu0 %v1589
    %v1696 = vpop.f32.mrb[0].mxu0
    %v1697 = vadd.f32 %v1628, %v1696
    %v1698 = vpop.f32.mrb[0].mxu0
    %1699 = vdwg.mxu0
    %v1700 = vmax.f32 %v1697, 0.0
    %v1701 = vld [vmem:[#allocation15] sm:$0xff]
    %v1702 = vld [vmem:[#allocation15 + $0x8] sm:$0xff]
    %v1703 = vld [vmem:[#allocation15 + $0x10] sm:$0xff]
    %v1704 = vld [vmem:[#allocation15 + $0x18] sm:$0xff]
    %v1705 = vld [vmem:[#allocation15 + $0x20] sm:$0xff]
    %v1706 = vld [vmem:[#allocation15 + $0x28] sm:$0xff]
    %v1707 = vld [vmem:[#allocation15 + $0x30] sm:$0xff]
    %v1708 = vld [vmem:[#allocation15 + $0x38] sm:$0xff]
    %v1709 = vld [vmem:[#allocation15 + $0x40] sm:$0xff]
    %v1710 = vld [vmem:[#allocation15 + $0x48] sm:$0xff]
    %v1711 = vld [vmem:[#allocation15 + $0x50] sm:$0xff]
    %v1712 = vld [vmem:[#allocation15 + $0x58] sm:$0xff]
    %v1713 = vld [vmem:[#allocation15 + $0x60] sm:$0xff]
    %v1714 = vld [vmem:[#allocation15 + $0x68] sm:$0xff]
    %v1715 = vld [vmem:[#allocation15 + $0x70] sm:$0xff]
    %v1716 = vld [vmem:[#allocation15 + $0x78] sm:$0xff]
    %v1717 = vld [vmem:[#allocation17] sm:$0x1]
    %v1719 = vlaneseq
    %v1720 = vshrl.u32 %v1719, 7
    %v1721 = vsub.s32 0, %v1720
    %v1722 = vrot.slane %v1717, %v1721
    %1724 = vmatprep.subr.mxu0 0.0
    %1725 = vmatpush1.msra.mxu0 %v1701
    %1726 = vmatprep.subr.mxu0 0.0
    %1727 = vmatpush1.msra.mxu0 %v1702
    %1728 = vmatprep.subr.mxu0 0.0
    %1729 = vmatpush1.msra.mxu0 %v1703
    %1730 = vmatprep.subr.mxu0 0.0
    %1731 = vmatpush1.msra.mxu0 %v1704
    %1732 = vmatprep.subr.mxu0 0.0
    %1733 = vmatpush1.msra.mxu0 %v1705
    %1734 = vmatprep.subr.mxu0 0.0
    %1735 = vmatpush1.msra.mxu0 %v1706
    %1736 = vmatprep.subr.mxu0 0.0
    %1737 = vmatpush1.msra.mxu0 %v1707
    %1738 = vmatprep.subr.mxu0 0.0
    %1739 = vmatpush1.msra.mxu0 %v1708
    %1740 = vmatprep.subr.mxu0 0.0
    %1741 = vmatpush1.msra.mxu0 %v1709
    %1742 = vmatprep.subr.mxu0 0.0
    %1743 = vmatpush1.msra.mxu0 %v1710
    %1744 = vmatprep.subr.mxu0 0.0
    %1745 = vmatpush1.msra.mxu0 %v1711
    %1746 = vmatprep.subr.mxu0 0.0
    %1747 = vmatpush1.msra.mxu0 %v1712
    %1748 = vmatprep.subr.mxu0 0.0
    %1749 = vmatpush1.msra.mxu0 %v1713
    %1750 = vmatprep.subr.mxu0 0.0
    %1751 = vmatpush1.msra.mxu0 %v1714
    %1752 = vmatprep.subr.mxu0 0.0
    %1753 = vmatpush1.msra.mxu0 %v1715
    %1754 = vmatprep.subr.mxu0 0.0
    %1755 = vmatpush1.msra.mxu0 %v1716
    %1756 = vmatprep.subr.mxu0 0.0
    %1757 = vmatpush1.msra.mxu0 0.0
    %1758 = vmatprep.subr.mxu0 0.0
    %1759 = vmatpush1.msra.mxu0 0.0
    %1760 = vmatprep.subr.mxu0 0.0
    %1761 = vmatpush1.msra.mxu0 0.0
    %1762 = vmatprep.subr.mxu0 0.0
    %1763 = vmatpush1.msra.mxu0 0.0
    %1764 = vmatprep.subr.mxu0 0.0
    %1765 = vmatpush1.msra.mxu0 0.0
    %1766 = vmatprep.subr.mxu0 0.0
    %1767 = vmatpush1.msra.mxu0 0.0
    %1768 = vmatprep.subr.mxu0 0.0
    %1769 = vmatpush1.msra.mxu0 0.0
    %1770 = vmatprep.subr.mxu0 0.0
    %1771 = vmatpush1.msra.mxu0 0.0
    %1772 = vmatprep.subr.mxu0 0.0
    %1773 = vmatpush1.msra.mxu0 0.0
    %1774 = vmatprep.subr.mxu0 0.0
    %1775 = vmatpush1.msra.mxu0 0.0
    %1776 = vmatprep.subr.mxu0 0.0
    %1777 = vmatpush1.msra.mxu0 0.0
    %1778 = vmatprep.subr.mxu0 0.0
    %1779 = vmatpush1.msra.mxu0 0.0
    %1780 = vmatprep.subr.mxu0 0.0
    %1781 = vmatpush1.msra.mxu0 0.0
    %1782 = vmatprep.subr.mxu0 0.0
    %1783 = vmatpush1.msra.mxu0 0.0
    %1784 = vmatprep.subr.mxu0 0.0
    %1785 = vmatpush1.msra.mxu0 0.0
    %1786 = vmatprep.subr.mxu0 0.0
    %1787 = vmatpush1.msra.mxu0 0.0
    %1788 = vmatprep.mubr.f32.mxu0 0.0
    %1789 = vmatmul.mubr.f32.gmra.mrb[0].mxu0 %v1700
    %v1790 = vpop.f32.mrb[0].mxu0
    %v1791 = vadd.f32 %v1722, %v1790
    %v1792 = vpop.f32.mrb[0].mxu0
    %1793 = vdwg.mxu0
    %v1794 = vmax.f32 %v1791, 0.0
    %v1795 = vld [vmem:[#allocation18] sm:$0xff]
    %v1796 = vld [vmem:[#allocation18 + $0x8] sm:$0xff]
    %v1797 = vld [vmem:[#allocation18 + $0x10] sm:$0xff]
    %v1798 = vld [vmem:[#allocation18 + $0x18] sm:$0xff]
    %v1799 = vld [vmem:[#allocation18 + $0x20] sm:$0xff]
    %v1800 = vld [vmem:[#allocation18 + $0x28] sm:$0xff]
    %v1801 = vld [vmem:[#allocation18 + $0x30] sm:$0xff]
    %v1802 = vld [vmem:[#allocation18 + $0x38] sm:$0xff]
    %v1803 = vld [vmem:[#allocation18 + $0x40] sm:$0xff]
    %v1804 = vld [vmem:[#allocation18 + $0x48] sm:$0xff]
    %v1805 = vld [vmem:[#allocation18 + $0x50] sm:$0xff]
    %v1806 = vld [vmem:[#allocation18 + $0x58] sm:$0xff]
    %v1807 = vld [vmem:[#allocation18 + $0x60] sm:$0xff]
    %v1808 = vld [vmem:[#allocation18 + $0x68] sm:$0xff]
    %v1809 = vld [vmem:[#allocation18 + $0x70] sm:$0xff]
    %v1810 = vld [vmem:[#allocation18 + $0x78] sm:$0xff]
    %v1811 = vld [vmem:[#allocation20] sm:$0x1]
    %v1813 = vlaneseq
    %v1814 = vshrl.u32 %v1813, 7
    %v1815 = vsub.s32 0, %v1814
    %v1816 = vrot.slane %v1811, %v1815
    %1818 = vmatprep.subr.mxu0 0.0
    %1819 = vmatpush1.msra.mxu0 %v1795
    %1820 = vmatprep.subr.mxu0 0.0
    %1821 = vmatpush1.msra.mxu0 %v1796
    %1822 = vmatprep.subr.mxu0 0.0
    %1823 = vmatpush1.msra.mxu0 %v1797
    %1824 = vmatprep.subr.mxu0 0.0
    %1825 = vmatpush1.msra.mxu0 %v1798
    %1826 = vmatprep.subr.mxu0 0.0
    %1827 = vmatpush1.msra.mxu0 %v1799
    %1828 = vmatprep.subr.mxu0 0.0
    %1829 = vmatpush1.msra.mxu0 %v1800
    %1830 = vmatprep.subr.mxu0 0.0
    %1831 = vmatpush1.msra.mxu0 %v1801
    %1832 = vmatprep.subr.mxu0 0.0
    %1833 = vmatpush1.msra.mxu0 %v1802
    %1834 = vmatprep.subr.mxu0 0.0
    %1835 = vmatpush1.msra.mxu0 %v1803
    %1836 = vmatprep.subr.mxu0 0.0
    %1837 = vmatpush1.msra.mxu0 %v1804
    %1838 = vmatprep.subr.mxu0 0.0
    %1839 = vmatpush1.msra.mxu0 %v1805
    %1840 = vmatprep.subr.mxu0 0.0
    %1841 = vmatpush1.msra.mxu0 %v1806
    %1842 = vmatprep.subr.mxu0 0.0
    %1843 = vmatpush1.msra.mxu0 %v1807
    %1844 = vmatprep.subr.mxu0 0.0
    %1845 = vmatpush1.msra.mxu0 %v1808
    %1846 = vmatprep.subr.mxu0 0.0
    %1847 = vmatpush1.msra.mxu0 %v1809
    %1848 = vmatprep.subr.mxu0 0.0
    %1849 = vmatpush1.msra.mxu0 %v1810
    %1850 = vmatprep.subr.mxu0 0.0
    %1851 = vmatpush1.msra.mxu0 0.0
    %1852 = vmatprep.subr.mxu0 0.0
    %1853 = vmatpush1.msra.mxu0 0.0
    %1854 = vmatprep.subr.mxu0 0.0
    %1855 = vmatpush1.msra.mxu0 0.0
    %1856 = vmatprep.subr.mxu0 0.0
    %1857 = vmatpush1.msra.mxu0 0.0
    %1858 = vmatprep.subr.mxu0 0.0
    %1859 = vmatpush1.msra.mxu0 0.0
    %1860 = vmatprep.subr.mxu0 0.0
    %1861 = vmatpush1.msra.mxu0 0.0
    %1862 = vmatprep.subr.mxu0 0.0
    %1863 = vmatpush1.msra.mxu0 0.0
    %1864 = vmatprep.subr.mxu0 0.0
    %1865 = vmatpush1.msra.mxu0 0.0
    %1866 = vmatprep.subr.mxu0 0.0
    %1867 = vmatpush1.msra.mxu0 0.0
    %1868 = vmatprep.subr.mxu0 0.0
    %1869 = vmatpush1.msra.mxu0 0.0
    %1870 = vmatprep.subr.mxu0 0.0
    %1871 = vmatpush1.msra.mxu0 0.0
    %1872 = vmatprep.subr.mxu0 0.0
    %1873 = vmatpush1.msra.mxu0 0.0
    %1874 = vmatprep.subr.mxu0 0.0
    %1875 = vmatpush1.msra.mxu0 0.0
    %1876 = vmatprep.subr.mxu0 0.0
    %1877 = vmatpush1.msra.mxu0 0.0
    %1878 = vmatprep.subr.mxu0 0.0
    %1879 = vmatpush1.msra.mxu0 0.0
    %1880 = vmatprep.subr.mxu0 0.0
    %1881 = vmatpush1.msra.mxu0 0.0
    %1882 = vmatprep.mubr.f32.mxu0 0.0
    %1883 = vmatmul.mubr.f32.gmra.mrb[0].mxu0 %v1794
    %v1884 = vpop.f32.mrb[0].mxu0
    %v1885 = vadd.f32 %v1816, %v1884
    %v1886 = vpop.f32.mrb[0].mxu0
    %1887 = vdwg.mxu0
    %v1888 = vmax.f32 %v1885, 0.0
    %v1889 = vld [vmem:[#allocation21] sm:$0x1]
    %v1890 = vld [vmem:[#allocation2] sm:$0x1]
    %1892 = vset.pattern.permute.xlu0 0
    %1893 = vperm.xlu0 %1892, %v1890
    %v1894 = vpop.permute.xlu0 %1893
    %v1896 = vlaneseq
    %v1897 = vshrl.u32 %v1896, 7
    %v1898 = vsub.s32 0, %v1897
    %v1899 = vrot.slane %v1894, %v1898
    %1900 = vmatprep.subr.mxu0 0.0
    %1901 = vmatpush1.xpose.msra.mxu0 %v1888
    %1902 = vmatprep.subr.mxu0 0.0
    %1903 = vmatpush1.xpose.msra.mxu0 0.0
    %1904 = vmatprep.subr.mxu0 0.0
    %1905 = vmatpush1.xpose.msra.mxu0 0.0
    %1906 = vmatprep.subr.mxu0 0.0
    %1907 = vmatpush1.xpose.msra.mxu0 0.0
    %1908 = vmatprep.subr.mxu0 0.0
    %1909 = vmatpush1.xpose.msra.mxu0 0.0
    %1910 = vmatprep.subr.mxu0 0.0
    %1911 = vmatpush1.xpose.msra.mxu0 0.0
    %1912 = vmatprep.subr.mxu0 0.0
    %1913 = vmatpush1.xpose.msra.mxu0 0.0
    %1914 = vmatprep.subr.mxu0 0.0
    %1915 = vmatpush1.xpose.msra.mxu0 0.0
    %1916 = vmatprep.subr.mxu0 0.0
    %1917 = vmatpush1.xpose.msra.mxu0 0.0
    %1918 = vmatprep.subr.mxu0 0.0
    %1919 = vmatpush1.xpose.msra.mxu0 0.0
    %1920 = vmatprep.subr.mxu0 0.0
    %1921 = vmatpush1.xpose.msra.mxu0 0.0
    %1922 = vmatprep.subr.mxu0 0.0
    %1923 = vmatpush1.xpose.msra.mxu0 0.0
    %1924 = vmatprep.subr.mxu0 0.0
    %1925 = vmatpush1.xpose.msra.mxu0 0.0
    %1926 = vmatprep.subr.mxu0 0.0
    %1927 = vmatpush1.xpose.msra.mxu0 0.0
    %1928 = vmatprep.subr.mxu0 0.0
    %1929 = vmatpush1.xpose.msra.mxu0 0.0
    %1930 = vmatprep.subr.mxu0 0.0
    %1931 = vmatpush1.xpose.msra.mxu0 0.0
    %1932 = vmatprep.subr.mxu0 0.0
    %1933 = vmatpush1.xpose.msra.mxu0 0.0
    %1934 = vmatprep.subr.mxu0 0.0
    %1935 = vmatpush1.xpose.msra.mxu0 0.0
    %1936 = vmatprep.subr.mxu0 0.0
    %1937 = vmatpush1.xpose.msra.mxu0 0.0
    %1938 = vmatprep.subr.mxu0 0.0
    %1939 = vmatpush1.xpose.msra.mxu0 0.0
    %1940 = vmatprep.subr.mxu0 0.0
    %1941 = vmatpush1.xpose.msra.mxu0 0.0
    %1942 = vmatprep.subr.mxu0 0.0
    %1943 = vmatpush1.xpose.msra.mxu0 0.0
    %1944 = vmatprep.subr.mxu0 0.0
    %1945 = vmatpush1.xpose.msra.mxu0 0.0
    %1946 = vmatprep.subr.mxu0 0.0
    %1947 = vmatpush1.xpose.msra.mxu0 0.0
    %1948 = vmatprep.subr.mxu0 0.0
    %1949 = vmatpush1.xpose.msra.mxu0 0.0
    %1950 = vmatprep.subr.mxu0 0.0
    %1951 = vmatpush1.xpose.msra.mxu0 0.0
    %1952 = vmatprep.subr.mxu0 0.0
    %1953 = vmatpush1.xpose.msra.mxu0 0.0
    %1954 = vmatprep.subr.mxu0 0.0
    %1955 = vmatpush1.xpose.msra.mxu0 0.0
    %1956 = vmatprep.subr.mxu0 0.0
    %1957 = vmatpush1.xpose.msra.mxu0 0.0
    %1958 = vmatprep.subr.mxu0 0.0
    %1959 = vmatpush1.xpose.msra.mxu0 0.0
    %1960 = vmatprep.subr.mxu0 0.0
    %1961 = vmatpush1.xpose.msra.mxu0 0.0
    %1962 = vmatprep.subr.mxu0 0.0
    %1963 = vmatpush1.xpose.msra.mxu0 0.0
    %1964 = vmatprep.mubr.f32.mxu0 0.0
    %1965 = vmatmul.mubr.f32.gmra.mrb[0].mxu0 %v1889
    %v1966 = vpop.f32.mrb[0].mxu0
    %v1967 = vadd.f32 %v1899, %v1966
    %v1968 = vpop.f32.mrb[0].mxu0
    %1969 = vdwg.mxu0
    %vm1970 = vcmask 57344
    %1971 = vst.msk [vmem:[#allocation23] sm:$0x1] %vm1970, %v1967
    // Predicated region
    $region106: #{tpu_custom_call.1} parent=1 // pred_check
      _
    $region107: #{tpu_custom_call.1} parent=1 // pred_check_branch
      %1973 = sbr.rel (0) target = $region109
    $region108: #{tpu_custom_call.1} parent=1 // pred_region
      %s1975 = ssub.s32 16, 16
      %1976 = vsyncadd [#allocation5], %s1975
      %s1978 = sshll.u32 [#allocation23], 4
      %s1979 = int_to_ptr.vmem [resolvable:$true] %s1978
      %1981 = dma.vmem_to_hbm [thread:$0]  %s1979, 16, %s14, [#allocation5]
    $region109: #{tpu_custom_call.1} parent=1 // pred_fallthru
      _
    // Predicated region
    $region110: #{tpu_custom_call.1} parent=1 // pred_check
      _
    $region111: #{tpu_custom_call.1} parent=1 // pred_check_branch
      %1983 = sbr.rel (0) target = $region113
    $region112: #{tpu_custom_call.1} parent=1 // pred_region
      %1984 = dma.done [#allocation5], 16
    $region113: #{tpu_custom_call.1} parent=1 // pred_fallthru
      _
    %1985 = vsyncpa [#allocation4], 1
    %1986 = vsyncpa [#allocation7], 1
    %1987 = vsyncpa [#allocation10], 1
    %1988 = vsyncpa [#allocation13], 1
    %1989 = vsyncpa [#allocation16], 1
    %1990 = vsyncpa [#allocation19], 1
    %1991 = vsyncpa [#allocation22], 1
    %1992 = vsyncpa [#allocation5], 1

</llo_original>
